<compile_context>
chip_gen: v7x
topology: tpu7x:2x2x1
jax: 0.10.0
libtpu: 0.0.40
codegen_flags: <defaults>
</compile_context>

<pallas_src>
import jax
import jax.numpy as jnp
from jax.experimental import pallas as pl
from jax.experimental.pallas import tpu as pltpu


# ----------------------------------------------------------------------------
# Static tap tables.
#   conv 4x4/s2/p1  ==  2x2/s1 conv on space-to-depth(pad1(x));  taps (a, b).
#   deconv 4x4/s2/p1 == 4 output phases (rp, cp), each a 2x2/s1 conv on pad1(x)
#   with row/col start offset (rp, cp); final out[2i+rp, 2j+cp] = phase[rp,cp][i,j].
# Each tap entry is (phase_index, row_start, col_start, weight_index).
# ----------------------------------------------------------------------------
CONV_TAPS = tuple((0, a, b, a * 2 + b) for a in (0, 1) for b in (0, 1))


def _make_deconv_taps():
    taps, wi = [], 0
    for rp in (0, 1):
        for cp in (0, 1):
            for a in (0, 1):
                for b in (0, 1):
                    taps.append((rp * 2 + cp, rp + a, cp + b, wi))
                    wi += 1
    return tuple(taps)


DECONV_TAPS = _make_deconv_taps()


# ----------------------------------------------------------------------------
# Path A: fused in-kernel tap-gather conv (large spatial layers).
#   out[ph][i, j, :] = act( sum_taps X[i + c, j + s, :] @ W[tap]  * scale + shift )
# Grid = (row blocks,); the input block carries `halo` extra rows baked into the
# layout so each step only touches its own contiguous block (no overlapping
# BlockSpecs, no manual DMA).
# ----------------------------------------------------------------------------
def _make_tap_kernel(tap_list, th, Wo, tanh_out):
    row_starts = sorted({c for _, c, _, _ in tap_list})
    by_phase = {}
    for ph, c, s, wi in tap_list:
        by_phase.setdefault(ph, []).append((c, s, wi))

    def kernel(x_ref, w_ref, scale_ref, shift_ref, o_ref):
        scale = scale_ref[...]                       # (1, Coutp) f32
        shift = shift_ref[...]
        # Load each needed row band once (leading-dim slice: always cheap).
        rows = {c: x_ref[c:c + th] for c in row_starts}   # (th, Wx, Cg) each
        for ph in sorted(by_phase):
            acc = None
            for (c, s, wi) in by_phase[ph]:
                xa = rows[c][:, s:s + Wo, :]               # (th, Wo, Cg)
                xa = xa.reshape(th * Wo, xa.shape[-1])     # Wo % 16 == 0 -> layout-preserving
                d = jnp.dot(xa, w_ref[wi], preferred_element_type=jnp.float32)
                acc = d if acc is None else acc + d
            y = acc * scale + shift
            if tanh_out:
                y = jnp.tanh(y)
            o_ref[ph] = y.astype(o_ref.dtype).reshape(th, Wo, y.shape[-1])

    return kernel


def tap_conv(x, wg, scale, shift, tap_list, halo, Ho, Wo, tanh_out=False):
    # x: (Hx, Wx, Cg) bf16 (padded/packed, already activated)
    # wg: (n_w, Cg, Coutp) bf16; scale/shift: (1, Coutp) f32
    Hx, Wx, Cg = x.shape
    n_w, _, Coutp = wg.shape
    P = max(t[0] for t in tap_list) + 1
    assert Wo % 16 == 0 and Ho % 16 == 0            # bf16 sublane-tile friendly
    th = min(Ho, max(16, 2048 // Wo))               # ~<=2048 GEMM rows per step
    assert Ho % th == 0
    nblk = Ho // th
    hr = th + halo
    assert nblk * th + halo == Hx and Wo + halo == Wx

    # Bake the halo into the layout: block i holds padded rows [i*th, i*th+hr).
    xb = jnp.stack([x[i * th: i * th + hr] for i in range(nblk)], axis=0)

    return pl.pallas_call(
        _make_tap_kernel(tap_list, th, Wo, tanh_out),
        out_shape=jax.ShapeDtypeStruct((P, Ho, Wo, Coutp), jnp.bfloat16),
        grid_spec=pltpu.PrefetchScalarGridSpec(
            num_scalar_prefetch=0,
            grid=(nblk,),
            in_specs=[
                pl.BlockSpec((None, hr, Wx, Cg), lambda i: (i, 0, 0, 0)),
                pl.BlockSpec((n_w, Cg, Coutp), lambda i: (0, 0, 0)),
                pl.BlockSpec((1, Coutp), lambda i: (0, 0)),
                pl.BlockSpec((1, Coutp), lambda i: (0, 0)),
            ],
            out_specs=pl.BlockSpec((P, th, Wo, Coutp), lambda i: (0, i, 0, 0)),
        ),
        compiler_params=pltpu.CompilerParams(
            dimension_semantics=("parallel",),
            vmem_limit_bytes=48 * 1024 * 1024,      # < 64 MiB per-TC VMEM on v7x
        ),
    )(xb, wg, scale, shift)


# ----------------------------------------------------------------------------
# Path B: whole-block im2col GEMM (tiny inner layers; weight-stream bound).
#   No K tiling, no N split (review: the old N-split only helped v7x megacore).
# ----------------------------------------------------------------------------
def _gemm_kernel(x_ref, w_ref, scale_ref, shift_ref, o_ref):
    y = jnp.dot(x_ref[...], w_ref[...], preferred_element_type=jnp.float32)
    o_ref[...] = (y * scale_ref[...] + shift_ref[...]).astype(o_ref.dtype)


def phase_gemm(patches, wg, scale, shift):
    # patches: (P, M, K) bf16; wg: (P, K, N) bf16; scale/shift: (1, N) f32
    P, M, K = patches.shape
    _, _, N = wg.shape
    return pl.pallas_call(
        _gemm_kernel,
        out_shape=jax.ShapeDtypeStruct((P, M, N), jnp.bfloat16),
        grid_spec=pltpu.PrefetchScalarGridSpec(
            num_scalar_prefetch=0,
            grid=(P,),
            in_specs=[
                pl.BlockSpec((None, M, K), lambda p: (p, 0, 0)),
                pl.BlockSpec((None, K, N), lambda p: (p, 0, 0)),
                pl.BlockSpec((1, N), lambda p: (0, 0)),
                pl.BlockSpec((1, N), lambda p: (0, 0)),
            ],
            out_specs=pl.BlockSpec((None, M, N), lambda p: (p, 0, 0)),
        ),
        compiler_params=pltpu.CompilerParams(
            dimension_semantics=("parallel",),
            vmem_limit_bytes=48 * 1024 * 1024,
        ),
    )(patches, wg, scale, shift)


# ----------------------------------------------------------------------------
# Layer wrappers (single image, NHWC without batch; bf16 internally).
# ----------------------------------------------------------------------------
def _interleave_phases(out):
    # out: (4, H, W, C) with phase p = 2*rp + cp -> (2H, 2W, C)
    _, H, W, C = out.shape
    o = out.reshape(2, 2, H, W, C)
    o = jnp.transpose(o, (2, 0, 3, 1, 4))
    return o.reshape(2 * H, 2 * W, C)


def conv4x4_s2_A(x, wg, scale, shift):
    H, W, C = x.shape
    Cin = wg.shape[1] // 4
    x = x.astype(jnp.bfloat16)
    if C < Cin:                                     # conv1: pad Cin 1 -> 2
        x = jnp.pad(x, ((0, 0), (0, 0), (0, Cin - C)))
    Ho, Wo = H // 2, W // 2
    Hp, Wp = Ho + 1, Wo + 1
    xp = jnp.pad(x, ((1, 1), (1, 1), (0, 0)))
    xs = xp.reshape(Hp, 2, Wp, 2, Cin).transpose(0, 2, 1, 3, 4).reshape(Hp, Wp, 4 * Cin)
    out = tap_conv(xs, wg, scale, shift, CONV_TAPS, halo=1, Ho=Ho, Wo=Wo)
    return out[0]                                   # (Ho, Wo, Cout) bf16


def deconv4x4_s2_A(x, wg, scale, shift, tanh_out=False, n_real=None):
    H, W, _ = x.shape
    xp = jnp.pad(x.astype(jnp.bfloat16), ((1, 1), (1, 1), (0, 0)))
    out = tap_conv(xp, wg, scale, shift, DECONV_TAPS, halo=2, Ho=H, Wo=W,
                   tanh_out=tanh_out)
    o = _interleave_phases(out)
    if n_real is not None and n_real != o.shape[-1]:
        o = o[..., :n_real]                         # drop lane-padding columns
    return o


def conv4x4_s2_B(x, wg, scale, shift):
    H, W, C = x.shape
    Ho, Wo = H // 2, W // 2
    xp = jnp.pad(x.astype(jnp.bfloat16), ((1, 1), (1, 1), (0, 0)))
    taps = [xp[kh:kh + 2 * Ho:2, kw:kw + 2 * Wo:2, :]
            for kh in range(4) for kw in range(4)]
    p = jnp.stack(taps, axis=2).reshape(1, Ho * Wo, 16 * C)
    out = phase_gemm(p, wg, scale, shift)
    return out[0].reshape(Ho, Wo, -1)


def deconv4x4_s2_B(x, wg, scale, shift):
    H, W, C = x.shape
    xb = x.astype(jnp.bfloat16)
    phases = []
    for rp in (0, 1):
        for cp in (0, 1):
            pad_r = (1, 0) if rp == 0 else (0, 1)
            pad_c = (1, 0) if cp == 0 else (0, 1)
            xp = jnp.pad(xb, (pad_r, pad_c, (0, 0)))
            t = [xp[a:a + H, b:b + W, :] for a in (0, 1) for b in (0, 1)]
            phases.append(jnp.stack(t, axis=2).reshape(H * W, 4 * C))
    p = jnp.stack(phases, axis=0)
    out = phase_gemm(p, wg, scale, shift)           # (4, H*W, Cout)
    return _interleave_phases(out.reshape(4, H, W, -1))


# ----------------------------------------------------------------------------
# Parameters (deterministic, in-script), BN folding, GEMM-layout prep.
# ----------------------------------------------------------------------------
def no_bn(bias):
    return jnp.ones((1, bias.shape[0]), jnp.float32), bias[None, :].astype(jnp.float32)


def bn_fold(bias, bn, eps=1e-5):
    gamma, beta, rmean, rvar = bn
    scale = gamma / jnp.sqrt(rvar + eps)
    shift = beta + (bias - rmean) * scale
    return scale[None, :], shift[None, :]


def _prep_conv_A(w, scale, shift, cin_min=2):
    # w: (Cout, Cin, 4, 4) -> (4 taps (a,b), 4*Cin, Cout), K ordered (qr, qc, ci)
    Cout, Cin = w.shape[0], w.shape[1]
    if Cin < cin_min:
        w = jnp.pad(w, ((0, 0), (0, cin_min - Cin), (0, 0), (0, 0)))
        Cin = cin_min
    wt = jnp.transpose(w, (2, 3, 1, 0))             # (kh, kw, Cin, Cout)
    taps = [wt[2 * a:2 * a + 2, 2 * b:2 * b + 2].reshape(4 * Cin, Cout)
            for a in (0, 1) for b in (0, 1)]
    return jnp.stack(taps, 0).astype(jnp.bfloat16), scale, shift


def _prep_deconv_A(w, scale, shift, pad_to=None):
    # w: (Cin, Cout, 4, 4) torch layout -> (16, Cin, Cout); order matches DECONV_TAPS
    Cin, Cout = w.shape[0], w.shape[1]
    taps = []
    for rp in (0, 1):
        for cp in (0, 1):
            for a in (0, 1):
                for b in (0, 1):
                    kh = (3 - rp) - 2 * a
                    kw = (3 - cp) - 2 * b
                    taps.append(w[:, :, kh, kw])    # (Cin, Cout)
    wg = jnp.stack(taps, 0).astype(jnp.bfloat16)
    if pad_to is not None and pad_to > Cout:
        pad = pad_to - Cout
        wg = jnp.pad(wg, ((0, 0), (0, 0), (0, pad)))
        scale = jnp.pad(scale, ((0, 0), (0, pad)), constant_values=1.0)
        shift = jnp.pad(shift, ((0, 0), (0, pad)))
    return wg, scale, shift


def _prep_conv_B(w, scale, shift):
    # w: (Cout, Cin, 4, 4) -> (1, 16*Cin, Cout), K ordered (kh, kw, ci)
    Cout = w.shape[0]
    wg = jnp.transpose(w, (2, 3, 1, 0)).reshape(-1, Cout).astype(jnp.bfloat16)
    return wg[None], scale, shift


def _prep_deconv_B(w, scale, shift):
    # w: (Cin, Cout, 4, 4) -> per-phase 2x2 direct-conv weights (4, 4*Cin, Cout)
    Cin, Cout = w.shape[0], w.shape[1]
    wps = []
    for rp in (0, 1):
        for cp in (0, 1):
            kh = [3, 1] if rp == 0 else [2, 0]
            kw = [3, 1] if cp == 0 else [2, 0]
            ws = w[:, :, kh, :][:, :, :, kw]        # (Cin, Cout, 2, 2)
            wps.append(jnp.transpose(ws, (2, 3, 0, 1)).reshape(4 * Cin, Cout))
    return jnp.stack(wps, 0).astype(jnp.bfloat16), scale, shift


def make_params(key):
    conv_defs = [("conv1", 1, 64), ("conv2", 64, 128), ("conv3", 128, 256),
                 ("conv4", 256, 512), ("conv5", 512, 512), ("conv6", 512, 512),
                 ("conv7", 512, 512), ("conv8", 512, 512)]
    deconv_defs = [("deconv8", 512, 512), ("deconv7", 1024, 512),
                   ("deconv6", 1024, 512), ("deconv5", 1024, 512),
                   ("deconv4", 1024, 256), ("deconv3", 512, 128),
                   ("deconv2", 256, 64), ("deconv1", 128, 3)]
    bn_dims = {"bn_64": 64, "bn_128": 128, "bn_256": 256, "bn_512": 512}

    keys = jax.random.split(key, len(conv_defs) + len(deconv_defs) + len(bn_dims))
    params, ki = {}, 0
    for name, cin, cout in conv_defs:
        std = (cin * 16) ** -0.5
        params[name + "_w"] = std * jax.random.normal(keys[ki], (cout, cin, 4, 4), jnp.float32)
        params[name + "_b"] = jnp.zeros((cout,), jnp.float32)
        ki += 1
    for name, cin, cout in deconv_defs:
        std = (cin * 16) ** -0.5
        params[name + "_w"] = std * jax.random.normal(keys[ki], (cin, cout, 4, 4), jnp.float32)
        params[name + "_b"] = jnp.zeros((cout,), jnp.float32)
        ki += 1
    for name, c in bn_dims.items():
        g = 1.0 + 0.1 * jax.random.normal(keys[ki], (c,), jnp.float32)
        b = 0.1 * jax.random.normal(jax.random.fold_in(keys[ki], 1), (c,), jnp.float32)
        params[name] = (g, b, jnp.zeros((c,), jnp.float32), jnp.ones((c,), jnp.float32))
        ki += 1
    return params


_CONV_BN = {"conv1": None, "conv2": "bn_128", "conv3": "bn_256", "conv4": "bn_512",
            "conv5": "bn_512", "conv6": "bn_512", "conv7": "bn_512", "conv8": None}
_DECONV_BN = {"deconv8": "bn_512", "deconv7": "bn_512", "deconv6": "bn_512",
              "deconv5": "bn_512", "deconv4": "bn_256", "deconv3": "bn_128",
              "deconv2": "bn_64", "deconv1": None}


def prepare_params(p):
    def fold(name, bn):
        return bn_fold(p[name + "_b"], p[bn]) if bn else no_bn(p[name + "_b"])

    prep = {}
    for name in ("conv1", "conv2", "conv3", "conv4"):           # path A (big spatial)
        sc, sh = fold(name, _CONV_BN[name])
        prep[name] = _prep_conv_A(p[name + "_w"], sc, sh)
    for name in ("conv5", "conv6", "conv7", "conv8"):           # path B (tiny spatial)
        sc, sh = fold(name, _CONV_BN[name])
        prep[name] = _prep_conv_B(p[name + "_w"], sc, sh)
    for name in ("deconv8", "deconv7", "deconv6", "deconv5"):   # path B
        sc, sh = fold(name, _DECONV_BN[name])
        prep[name] = _prep_deconv_B(p[name + "_w"], sc, sh)
    for name in ("deconv4", "deconv3", "deconv2"):              # path A
        sc, sh = fold(name, _DECONV_BN[name])
        prep[name] = _prep_deconv_A(p[name + "_w"], sc, sh)
    sc, sh = no_bn(p["deconv1_b"])
    prep["deconv1"] = _prep_deconv_A(p["deconv1_w"], sc, sh, pad_to=8)
    return prep


# ----------------------------------------------------------------------------
# Forward pass (mirrors G.forward); NHWC + bf16 internally, NCHW f32 I/O, B == 1.
# ----------------------------------------------------------------------------
def _lrelu(t):
    return jnp.where(t > 0, t, 0.2 * t)


def _relu(t):
    return jnp.maximum(t, 0)


@jax.jit
def G_forward(prep, x_nchw):
    x = jnp.transpose(x_nchw[0], (1, 2, 0))                 # (H, W, 1)

    en1 = conv4x4_s2_A(x, *prep["conv1"])
    en2 = conv4x4_s2_A(_lrelu(en1), *prep["conv2"])
    en3 = conv4x4_s2_A(_lrelu(en2), *prep["conv3"])
    en4 = conv4x4_s2_A(_lrelu(en3), *prep["conv4"])
    en5 = conv4x4_s2_B(_lrelu(en4), *prep["conv5"])
    en6 = conv4x4_s2_B(_lrelu(en5), *prep["conv6"])
    en7 = conv4x4_s2_B(_lrelu(en6), *prep["conv7"])
    en8 = conv4x4_s2_B(_lrelu(en7), *prep["conv8"])

    de8 = deconv4x4_s2_B(_relu(en8), *prep["deconv8"])      # Dropout2d: eval identity
    de8 = jnp.concatenate([de8, en7], axis=-1)
    de7 = deconv4x4_s2_B(_relu(de8), *prep["deconv7"])
    de7 = jnp.concatenate([de7, en6], axis=-1)
    de6 = deconv4x4_s2_B(_relu(de7), *prep["deconv6"])
    de6 = jnp.concatenate([de6, en5], axis=-1)
    de5 = deconv4x4_s2_B(_relu(de6), *prep["deconv5"])
    de5 = jnp.concatenate([de5, en4], axis=-1)
    de4 = deconv4x4_s2_A(_relu(de5), *prep["deconv4"])
    de4 = jnp.concatenate([de4, en3], axis=-1)
    de3 = deconv4x4_s2_A(_relu(de4), *prep["deconv3"])
    de3 = jnp.concatenate([de3, en2], axis=-1)
    de2 = deconv4x4_s2_A(_relu(de3), *prep["deconv2"])
    de2 = jnp.concatenate([de2, en1], axis=-1)
    de1 = deconv4x4_s2_A(_relu(de2), *prep["deconv1"], tanh_out=True, n_real=3)
    out = de1.astype(jnp.float32)
    return jnp.transpose(out, (2, 0, 1))[None]              # back to NCHW


# ----------------------------------------------------------------------------
# Numeric self-tests of the conv / deconv decompositions (review request).
# ----------------------------------------------------------------------------
def _ref_conv4x4_s2(x, w, b):
    y = jax.lax.conv_general_dilated(
        x, jnp.transpose(w, (2, 3, 1, 0)), window_strides=(2, 2),
        padding=((1, 1), (1, 1)), dimension_numbers=("NHWC", "HWIO", "NHWC"),
        precision=jax.lax.Precision.HIGHEST)
    return y + b


def _ref_deconv4x4_s2(x, w, b):
    # Explicit scatter reference of torch ConvTranspose2d(k=4, s=2, p=1).
    B, H, W, _ = x.shape
    Co = w.shape[1]
    y = jnp.zeros((B, 2 * H + 2, 2 * W + 2, Co), jnp.float32)
    for kh in range(4):
        for kw in range(4):
            contrib = jnp.einsum("bijc,cd->bijd", x, w[:, :, kh, kw],
                                 precision=jax.lax.Precision.HIGHEST)
            y = y.at[:, kh:kh + 2 * H:2, kw:kw + 2 * W:2, :].add(contrib)
    return y[:, 1:2 * H + 1, 1:2 * W + 1, :] + b


def _round_bf16(a):
    return a.astype(jnp.bfloat16).astype(jnp.float32)


def _check(got, want, name, tol=2e-2):
    err = float(jnp.max(jnp.abs(got.astype(jnp.float32) - want)))
    scale = float(jnp.max(jnp.abs(want))) + 1.0
    assert err <= tol * scale, f"{name}: max abs err {err} (scale {scale})"


def _self_test(key):
    k = jax.random.split(key, 12)
    # Path A conv (also exercises the Cin 1->2 pad used by conv1).
    x = jax.random.normal(k[0], (32, 32, 1), jnp.float32)
    w = 0.25 * jax.random.normal(k[1], (16, 1, 4, 4), jnp.float32)
    b = 0.1 * jax.random.normal(k[2], (16,), jnp.float32)
    got = conv4x4_s2_A(x, *_prep_conv_A(w, *no_bn(b)))
    _check(got, _ref_conv4x4_s2(_round_bf16(x)[None], _round_bf16(w), b)[0], "conv_A")
    # Path A deconv (4-phase decomposition, 2 row blocks -> halo logic).
    x = jax.random.normal(k[3], (64, 64, 8), jnp.float32)
    w = 0.25 * jax.random.normal(k[4], (8, 8, 4, 4), jnp.float32)
    b = 0.1 * jax.random.normal(k[5], (8,), jnp.float32)
    got = deconv4x4_s2_A(x, *_prep_deconv_A(w, *no_bn(b)))
    _check(got, _ref_deconv4x4_s2(_round_bf16(x)[None], _round_bf16(w), b)[0], "deconv_A")
    # Path B conv.
    x = jax.random.normal(k[6], (4, 4, 8), jnp.float32)
    w = 0.1 * jax.random.normal(k[7], (16, 8, 4, 4), jnp.float32)
    b = 0.1 * jax.random.normal(k[8], (16,), jnp.float32)
    got = conv4x4_s2_B(x, *_prep_conv_B(w, *no_bn(b)))
    _check(got, _ref_conv4x4_s2(_round_bf16(x)[None], _round_bf16(w), b)[0], "conv_B")
    # Path B deconv.
    x = jax.random.normal(k[9], (2, 2, 8), jnp.float32)
    w = 0.25 * jax.random.normal(k[10], (8, 16, 4, 4), jnp.float32)
    b = 0.1 * jax.random.normal(k[11], (16,), jnp.float32)
    got = deconv4x4_s2_B(x, *_prep_deconv_B(w, *no_bn(b)))
    _check(got, _ref_deconv4x4_s2(_round_bf16(x)[None], _round_bf16(w), b)[0], "deconv_B")


if __name__ == "__main__":
    key = jax.random.PRNGKey(0)
    tkey, pkey, xkey = jax.random.split(key, 3)

    _self_test(tkey)

    params = make_params(pkey)
    prep = prepare_params(params)

    # 8 stride-2 downsamplings require spatial 256; keep batch/channels minimal.
    x = jax.random.normal(xkey, (1, 1, 256, 256), jnp.float32)

    out = G_forward(prep, x)
    out = jax.block_until_ready(out)

    assert out.shape == (1, 3, 256, 256), out.shape
    assert bool(jnp.all(jnp.isfinite(out)))
    assert bool(jnp.all(jnp.abs(out) <= 1.0 + 1e-6))       # tanh output range
    print("KERNEL_OK")
</pallas_src>

<mosaic_0001>
module attributes {stable_mosaic.version = 11 : i64} {
  func.func @kernel(%arg0: i32, %arg1: memref<1x17x17x8xbf16, #tpu.memory_space<vmem>>, %arg2: memref<4x8x16xbf16, #tpu.memory_space<vmem>>, %arg3: memref<1x16xf32, #tpu.memory_space<vmem>>, %arg4: memref<1x16xf32, #tpu.memory_space<vmem>>, %arg5: memref<1x16x16x16xbf16, #tpu.memory_space<vmem>>) attributes {dimension_semantics = [#tpu.dimension_semantics<parallel>], iteration_bounds = array<i64: 1>, scalar_prefetch = 0 : i64, scratch_operands = 0 : i64, tpu.core_type = #tpu.core_type<tc>, window_params = [{transform_indices = @transform_0, window_bounds = array<i64: 1, 17, 17, 8>}, {pipeline_mode = #tpu.pipeline_mode<synchronous>, transform_indices = @transform_1, window_bounds = array<i64: 4, 8, 16>}, {pipeline_mode = #tpu.pipeline_mode<synchronous>, transform_indices = @transform_2, window_bounds = array<i64: 1, 16>}, {pipeline_mode = #tpu.pipeline_mode<synchronous>, transform_indices = @transform_3, window_bounds = array<i64: 1, 16>}, {transform_indices = @transform_4, window_bounds = array<i64: 1, 16, 16, 16>}]} {
    %c0 = arith.constant 0 : index
    %c0_0 = arith.constant 0 : index
    %0 = vector.load %arg3[%c0, %c0_0] : memref<1x16xf32, #tpu.memory_space<vmem>>, vector<1x16xf32>
    %c0_1 = arith.constant 0 : index
    %c0_2 = arith.constant 0 : index
    %1 = vector.load %arg4[%c0_1, %c0_2] : memref<1x16xf32, #tpu.memory_space<vmem>>, vector<1x16xf32>
    %c0_3 = arith.constant 0 : index
    %c0_4 = arith.constant 0 : index
    %c0_5 = arith.constant 0 : index
    %c0_6 = arith.constant 0 : index
    %2 = vector.load %arg1[%c0_3, %c0_4, %c0_5, %c0_6] : memref<1x17x17x8xbf16, #tpu.memory_space<vmem>>, vector<1x16x17x8xbf16>
    %3 = vector.shape_cast %2 : vector<1x16x17x8xbf16> to vector<16x17x8xbf16>
    %c0_7 = arith.constant 0 : index
    %c1 = arith.constant 1 : index
    %c0_8 = arith.constant 0 : index
    %c0_9 = arith.constant 0 : index
    %4 = vector.load %arg1[%c0_7, %c1, %c0_8, %c0_9] : memref<1x17x17x8xbf16, #tpu.memory_space<vmem>>, vector<1x16x17x8xbf16>
    %5 = vector.shape_cast %4 : vector<1x16x17x8xbf16> to vector<16x17x8xbf16>
    %6 = vector.extract_strided_slice %3 {offsets = [0, 0, 0], sizes = [16, 16, 8], strides = [1, 1, 1]} : vector<16x17x8xbf16> to vector<16x16x8xbf16>
    %7 = vector.shape_cast %6 : vector<16x16x8xbf16> to vector<256x8xbf16>
    %c0_10 = arith.constant 0 : index
    %c0_11 = arith.constant 0 : index
    %c0_12 = arith.constant 0 : index
    %8 = vector.load %arg2[%c0_10, %c0_11, %c0_12] : memref<4x8x16xbf16, #tpu.memory_space<vmem>>, vector<1x8x16xbf16>
    %9 = vector.shape_cast %8 : vector<1x8x16xbf16> to vector<8x16xbf16>
    %cst = arith.constant dense<0.000000e+00> : vector<256x16xf32>
    %10 = tpu.matmul %7, %9, %cst {dimension_numbers = #tpu.dot_dimension_numbers<[1], [0], [0], [1], [0, 0, 1, 1], [], []>} : vector<256x8xbf16>, vector<8x16xbf16>, vector<256x16xf32> -> vector<256x16xf32>
    %11 = vector.extract_strided_slice %3 {offsets = [0, 1, 0], sizes = [16, 16, 8], strides = [1, 1, 1]} : vector<16x17x8xbf16> to vector<16x16x8xbf16>
    %12 = vector.shape_cast %11 : vector<16x16x8xbf16> to vector<256x8xbf16>
    %c1_13 = arith.constant 1 : index
    %c0_14 = arith.constant 0 : index
    %c0_15 = arith.constant 0 : index
    %13 = vector.load %arg2[%c1_13, %c0_14, %c0_15] : memref<4x8x16xbf16, #tpu.memory_space<vmem>>, vector<1x8x16xbf16>
    %14 = vector.shape_cast %13 : vector<1x8x16xbf16> to vector<8x16xbf16>
    %cst_16 = arith.constant dense<0.000000e+00> : vector<256x16xf32>
    %15 = tpu.matmul %12, %14, %cst_16 {dimension_numbers = #tpu.dot_dimension_numbers<[1], [0], [0], [1], [0, 0, 1, 1], [], []>} : vector<256x8xbf16>, vector<8x16xbf16>, vector<256x16xf32> -> vector<256x16xf32>
    %16 = arith.addf %10, %15 : vector<256x16xf32>
    %17 = vector.extract_strided_slice %5 {offsets = [0, 0, 0], sizes = [16, 16, 8], strides = [1, 1, 1]} : vector<16x17x8xbf16> to vector<16x16x8xbf16>
    %18 = vector.shape_cast %17 : vector<16x16x8xbf16> to vector<256x8xbf16>
    %c2 = arith.constant 2 : index
    %c0_17 = arith.constant 0 : index
    %c0_18 = arith.constant 0 : index
    %19 = vector.load %arg2[%c2, %c0_17, %c0_18] : memref<4x8x16xbf16, #tpu.memory_space<vmem>>, vector<1x8x16xbf16>
    %20 = vector.shape_cast %19 : vector<1x8x16xbf16> to vector<8x16xbf16>
    %cst_19 = arith.constant dense<0.000000e+00> : vector<256x16xf32>
    %21 = tpu.matmul %18, %20, %cst_19 {dimension_numbers = #tpu.dot_dimension_numbers<[1], [0], [0], [1], [0, 0, 1, 1], [], []>} : vector<256x8xbf16>, vector<8x16xbf16>, vector<256x16xf32> -> vector<256x16xf32>
    %22 = arith.addf %16, %21 : vector<256x16xf32>
    %23 = vector.extract_strided_slice %5 {offsets = [0, 1, 0], sizes = [16, 16, 8], strides = [1, 1, 1]} : vector<16x17x8xbf16> to vector<16x16x8xbf16>
    %24 = vector.shape_cast %23 : vector<16x16x8xbf16> to vector<256x8xbf16>
    %c3 = arith.constant 3 : index
    %c0_20 = arith.constant 0 : index
    %c0_21 = arith.constant 0 : index
    %25 = vector.load %arg2[%c3, %c0_20, %c0_21] : memref<4x8x16xbf16, #tpu.memory_space<vmem>>, vector<1x8x16xbf16>
    %26 = vector.shape_cast %25 : vector<1x8x16xbf16> to vector<8x16xbf16>
    %cst_22 = arith.constant dense<0.000000e+00> : vector<256x16xf32>
    %27 = tpu.matmul %24, %26, %cst_22 {dimension_numbers = #tpu.dot_dimension_numbers<[1], [0], [0], [1], [0, 0, 1, 1], [], []>} : vector<256x8xbf16>, vector<8x16xbf16>, vector<256x16xf32> -> vector<256x16xf32>
    %28 = arith.addf %22, %27 : vector<256x16xf32>
    %29 = vector.broadcast %0 : vector<1x16xf32> to vector<256x16xf32>
    %30 = arith.mulf %28, %29 : vector<256x16xf32>
    %31 = vector.broadcast %1 : vector<1x16xf32> to vector<256x16xf32>
    %32 = arith.addf %30, %31 : vector<256x16xf32>
    %33 = arith.truncf %32 : vector<256x16xf32> to vector<256x16xbf16>
    %34 = vector.shape_cast %33 : vector<256x16xbf16> to vector<16x16x16xbf16>
    %c0_23 = arith.constant 0 : index
    %c0_24 = arith.constant 0 : index
    %c0_25 = arith.constant 0 : index
    %c0_26 = arith.constant 0 : index
    %35 = vector.load %arg5[%c0_23, %c0_24, %c0_25, %c0_26] : memref<1x16x16x16xbf16, #tpu.memory_space<vmem>>, vector<1x16x16x16xbf16>
    %36 = vector.shape_cast %35 : vector<1x16x16x16xbf16> to vector<16x16x16xbf16>
    %37 = vector.shape_cast %34 : vector<16x16x16xbf16> to vector<1x16x16x16xbf16>
    tpu.vector_store %arg5[%c0_23, %c0_24, %c0_25, %c0_26], %37 {strides = array<i32>} : memref<1x16x16x16xbf16, #tpu.memory_space<vmem>>, vector<1x16x16x16xbf16>,
    return
  }
  func.func @transform_0(%arg0: i32) -> (i32, i32, i32, i32) {
    %c0_i32 = arith.constant 0 : i32
    %c0_i32_0 = arith.constant 0 : i32
    %c0_i32_1 = arith.constant 0 : i32
    %c0_i32_2 = arith.constant 0 : i32
    return %arg0, %c0_i32, %c0_i32_0, %c0_i32_1 : i32, i32, i32, i32
  }
  func.func @transform_1(%arg0: i32) -> (i32, i32, i32) {
    %c0_i32 = arith.constant 0 : i32
    %c0_i32_0 = arith.constant 0 : i32
    %c0_i32_1 = arith.constant 0 : i32
    %c0_i32_2 = arith.constant 0 : i32
    return %c0_i32, %c0_i32_0, %c0_i32_1 : i32, i32, i32
  }
  func.func @transform_2(%arg0: i32) -> (i32, i32) {
    %c0_i32 = arith.constant 0 : i32
    %c0_i32_0 = arith.constant 0 : i32
    %c0_i32_1 = arith.constant 0 : i32
    return %c0_i32, %c0_i32_0 : i32, i32
  }
  func.func @transform_3(%arg0: i32) -> (i32, i32) {
    %c0_i32 = arith.constant 0 : i32
    %c0_i32_0 = arith.constant 0 : i32
    %c0_i32_1 = arith.constant 0 : i32
    return %c0_i32, %c0_i32_0 : i32, i32
  }
  func.func @transform_4(%arg0: i32) -> (i32, i32, i32, i32) {
    %c0_i32 = arith.constant 0 : i32
    %c0_i32_0 = arith.constant 0 : i32
    %c0_i32_1 = arith.constant 0 : i32
    %c0_i32_2 = arith.constant 0 : i32
    return %c0_i32, %arg0, %c0_i32_0, %c0_i32_1 : i32, i32, i32, i32
  }
}

</mosaic_0001>

<llo_original>
// kernel: tpu_custom_call.1
$region0: #{tpu_custom_call.1}
  #allocation0 [shape = 'u32[]', space=smem, size = 0x4, offset = 0x4, fixed_abs, tag = 'smem constant byte address 0x4 - core index']
  #allocation1 [shape = 'u32[144,128]{1,0:T(1,128)}', space=vmem, size = 0x12000, scoped, tag = 'internal scratch']
  %s0 = inlined_call_operand.vmem [shape: bf16[1,17,17,8], index: 0, kind: input, shape index: {}]
  %s1 = inlined_call_operand.vmem [shape: bf16[4,8,16], index: 1, kind: input, shape index: {}]
  %s2 = inlined_call_operand.vmem [shape: f32[1,16], index: 2, kind: input, shape index: {}]
  %s3 = inlined_call_operand.vmem [shape: f32[1,16], index: 3, kind: input, shape index: {}]
  %s4 = inlined_call_operand.hbm [shape: bf16[1,16,16,16], index: 4, kind: output, shape index: {}]
  %s5 = sld [smem:[#allocation0]]
  $region26: #{tpu_custom_call.1} parent=0
    _
  %s7 = ssub.s32 1, %s5
  %s8 = scalar_select 0, %s7, %s5
  $region1: #{tpu_custom_call.1} parent=0
    #allocation2 [shape = 'u8[65536]{0}', space=vmem, size = 0x10000, scoped, tag = 'output window, operand 0, single buffered']
    #allocation3 [shape = 's32[1]{0}', space=sflag, size = 0x4, scoped, tag = 'scoped memory for tpu_custom_call.1']
    %9 = vsyncpa [#allocation3], 0
    // Predicated region
    $region2: #{tpu_custom_call.1} parent=1 // pred_check
      _
    $region3: #{tpu_custom_call.1} parent=1 // pred_check_branch
      %11 = sbr.rel (0) target = $region5
    $region4: #{tpu_custom_call.1} parent=1 // pred_region
      _
    $region5: #{tpu_custom_call.1} parent=1 // pred_fallthru
      _
    // Predicated region
    $region6: #{tpu_custom_call.1} parent=1 // pred_check
      _
    $region7: #{tpu_custom_call.1} parent=1 // pred_check_branch
      %13 = sbr.rel (0) target = $region9
    $region8: #{tpu_custom_call.1} parent=1 // pred_region
      _
    $region9: #{tpu_custom_call.1} parent=1 // pred_fallthru
      _
    // Predicated region
    $region10: #{tpu_custom_call.1} parent=1 // pred_check
      _
    $region11: #{tpu_custom_call.1} parent=1 // pred_check_branch
      %15 = sbr.rel (0) target = $region13
    $region12: #{tpu_custom_call.1} parent=1 // pred_region
      _
    $region13: #{tpu_custom_call.1} parent=1 // pred_fallthru
      _
    // Predicated region
    $region14: #{tpu_custom_call.1} parent=1 // pred_check
      _
    $region15: #{tpu_custom_call.1} parent=1 // pred_check_branch
      %17 = sbr.rel (0) target = $region17
    $region16: #{tpu_custom_call.1} parent=1 // pred_region
      _
    $region17: #{tpu_custom_call.1} parent=1 // pred_fallthru
      _
    %v19 = vld [vmem:[%s2] sm:$0x1]
    %v20 = vld [vmem:[%s3] sm:$0x1]
    %v21 = vld [vmem:[%s0] sm:$0xf]
    %v22 = vld [vmem:[%s0 + $0x4] sm:$0xf]
    %v23 = vld [vmem:[%s0 + $0x8] sm:$0x1]
    %v24 = vld [vmem:[%s0 + $0xc] sm:$0xf]
    %v25 = vld [vmem:[%s0 + $0x10] sm:$0xf]
    %v26 = vld [vmem:[%s0 + $0x14] sm:$0x1]
    %v27 = vld [vmem:[%s0 + $0x18] sm:$0xf]
    %v28 = vld [vmem:[%s0 + $0x1c] sm:$0xf]
    %v29 = vld [vmem:[%s0 + $0x20] sm:$0x1]
    %v30 = vld [vmem:[%s0 + $0x24] sm:$0xf]
    %v31 = vld [vmem:[%s0 + $0x28] sm:$0xf]
    %v32 = vld [vmem:[%s0 + $0x2c] sm:$0x1]
    %v33 = vld [vmem:[%s0 + $0x30] sm:$0xf]
    %v34 = vld [vmem:[%s0 + $0x34] sm:$0xf]
    %v35 = vld [vmem:[%s0 + $0x38] sm:$0x1]
    %v36 = vld [vmem:[%s0 + $0x3c] sm:$0xf]
    %v37 = vld [vmem:[%s0 + $0x40] sm:$0xf]
    %v38 = vld [vmem:[%s0 + $0x44] sm:$0x1]
    %v39 = vld [vmem:[%s0 + $0x48] sm:$0xf]
    %v40 = vld [vmem:[%s0 + $0x4c] sm:$0xf]
    %v41 = vld [vmem:[%s0 + $0x50] sm:$0x1]
    %v42 = vld [vmem:[%s0 + $0x54] sm:$0xf]
    %v43 = vld [vmem:[%s0 + $0x58] sm:$0xf]
    %v44 = vld [vmem:[%s0 + $0x5c] sm:$0x1]
    %v45 = vld [vmem:[%s0 + $0x60] sm:$0xf]
    %v46 = vld [vmem:[%s0 + $0x64] sm:$0xf]
    %v47 = vld [vmem:[%s0 + $0x68] sm:$0x1]
    %v48 = vld [vmem:[%s0 + $0x6c] sm:$0xf]
    %v49 = vld [vmem:[%s0 + $0x70] sm:$0xf]
    %v50 = vld [vmem:[%s0 + $0x74] sm:$0x1]
    %v51 = vld [vmem:[%s0 + $0x78] sm:$0xf]
    %v52 = vld [vmem:[%s0 + $0x7c] sm:$0xf]
    %v53 = vld [vmem:[%s0 + $0x80] sm:$0x1]
    %v54 = vld [vmem:[%s0 + $0x84] sm:$0xf]
    %v55 = vld [vmem:[%s0 + $0x88] sm:$0xf]
    %v56 = vld [vmem:[%s0 + $0x8c] sm:$0x1]
    %v57 = vld [vmem:[%s0 + $0x90] sm:$0xf]
    %v58 = vld [vmem:[%s0 + $0x94] sm:$0xf]
    %v59 = vld [vmem:[%s0 + $0x98] sm:$0x1]
    %v60 = vld [vmem:[%s0 + $0x9c] sm:$0xf]
    %v61 = vld [vmem:[%s0 + $0xa0] sm:$0xf]
    %v62 = vld [vmem:[%s0 + $0xa4] sm:$0x1]
    %v63 = vld [vmem:[%s0 + $0xa8] sm:$0xf]
    %v64 = vld [vmem:[%s0 + $0xac] sm:$0xf]
    %v65 = vld [vmem:[%s0 + $0xb0] sm:$0x1]
    %v66 = vld [vmem:[%s0 + $0xb4] sm:$0xf]
    %v67 = vld [vmem:[%s0 + $0xb8] sm:$0xf]
    %v68 = vld [vmem:[%s0 + $0xbc] sm:$0x1]
    %s69 = scalar_lea.vmem %s0, 12
    %v70 = vld [vmem:[%s69] sm:$0xf]
    %v71 = vld [vmem:[%s69 + $0x4] sm:$0xf]
    %v72 = vld [vmem:[%s69 + $0x8] sm:$0x1]
    %v73 = vld [vmem:[%s69 + $0xc] sm:$0xf]
    %v74 = vld [vmem:[%s69 + $0x10] sm:$0xf]
    %v75 = vld [vmem:[%s69 + $0x14] sm:$0x1]
    %v76 = vld [vmem:[%s69 + $0x18] sm:$0xf]
    %v77 = vld [vmem:[%s69 + $0x1c] sm:$0xf]
    %v78 = vld [vmem:[%s69 + $0x20] sm:$0x1]
    %v79 = vld [vmem:[%s69 + $0x24] sm:$0xf]
    %v80 = vld [vmem:[%s69 + $0x28] sm:$0xf]
    %v81 = vld [vmem:[%s69 + $0x2c] sm:$0x1]
    %v82 = vld [vmem:[%s69 + $0x30] sm:$0xf]
    %v83 = vld [vmem:[%s69 + $0x34] sm:$0xf]
    %v84 = vld [vmem:[%s69 + $0x38] sm:$0x1]
    %v85 = vld [vmem:[%s69 + $0x3c] sm:$0xf]
    %v86 = vld [vmem:[%s69 + $0x40] sm:$0xf]
    %v87 = vld [vmem:[%s69 + $0x44] sm:$0x1]
    %v88 = vld [vmem:[%s69 + $0x48] sm:$0xf]
    %v89 = vld [vmem:[%s69 + $0x4c] sm:$0xf]
    %v90 = vld [vmem:[%s69 + $0x50] sm:$0x1]
    %v91 = vld [vmem:[%s69 + $0x54] sm:$0xf]
    %v92 = vld [vmem:[%s69 + $0x58] sm:$0xf]
    %v93 = vld [vmem:[%s69 + $0x5c] sm:$0x1]
    %v94 = vld [vmem:[%s69 + $0x60] sm:$0xf]
    %v95 = vld [vmem:[%s69 + $0x64] sm:$0xf]
    %v96 = vld [vmem:[%s69 + $0x68] sm:$0x1]
    %v97 = vld [vmem:[%s69 + $0x6c] sm:$0xf]
    %v98 = vld [vmem:[%s69 + $0x70] sm:$0xf]
    %v99 = vld [vmem:[%s69 + $0x74] sm:$0x1]
    %v100 = vld [vmem:[%s69 + $0x78] sm:$0xf]
    %v101 = vld [vmem:[%s69 + $0x7c] sm:$0xf]
    %v102 = vld [vmem:[%s69 + $0x80] sm:$0x1]
    %v103 = vld [vmem:[%s69 + $0x84] sm:$0xf]
    %v104 = vld [vmem:[%s69 + $0x88] sm:$0xf]
    %v105 = vld [vmem:[%s69 + $0x8c] sm:$0x1]
    %v106 = vld [vmem:[%s69 + $0x90] sm:$0xf]
    %v107 = vld [vmem:[%s69 + $0x94] sm:$0xf]
    %v108 = vld [vmem:[%s69 + $0x98] sm:$0x1]
    %v109 = vld [vmem:[%s69 + $0x9c] sm:$0xf]
    %v110 = vld [vmem:[%s69 + $0xa0] sm:$0xf]
    %v111 = vld [vmem:[%s69 + $0xa4] sm:$0x1]
    %v112 = vld [vmem:[%s69 + $0xa8] sm:$0xf]
    %v113 = vld [vmem:[%s69 + $0xac] sm:$0xf]
    %v114 = vld [vmem:[%s69 + $0xb0] sm:$0x1]
    %v115 = vld [vmem:[%s69 + $0xb4] sm:$0xf]
    %v116 = vld [vmem:[%s69 + $0xb8] sm:$0xf]
    %v117 = vld [vmem:[%s69 + $0xbc] sm:$0x1]
    %v118 = vld [vmem:[%s1] sm:$0xf]
    %vm119 = vsmask.f32 3328
    %vm120 = vsmask.f32 7440
    %vm121 = vmor %vm119, %vm120
    %v123 = vshrl.u32 %v21, 16
    %v125 = vrot.slane %v123, 4
    %v126 = vshll.u32 %v21, 16
    %v128 = vrot.slane %v126, 5
    %v129 = vor.u32 %v125, %v128
    %v130 = vrot.slane %v129, 4
    %v132 = vshll.u32 %v22, 16
    %v134 = vrot.slane %v132, 5
    %v135 = vsel %vm121, %v130, %v134
    %v136 = vshrl.u32 %v22, 16
    %v138 = vrot.slane %v136, 4
    %v139 = vor.u32 %v138, %v134
    %v140 = vrot.slane %v139, 4
    %v142 = vshll.u32 %v23, 16
    %v144 = vrot.slane %v142, 5
    %v145 = vsel %vm121, %v140, %v144
    %v147 = vshrl.u32 %v24, 16
    %v149 = vrot.slane %v147, 4
    %v150 = vshll.u32 %v24, 16
    %v152 = vrot.slane %v150, 5
    %v153 = vor.u32 %v149, %v152
    %v154 = vrot.slane %v153, 4
    %v156 = vshll.u32 %v25, 16
    %v158 = vrot.slane %v156, 5
    %v159 = vsel %vm121, %v154, %v158
    %v160 = vshrl.u32 %v25, 16
    %v162 = vrot.slane %v160, 4
    %v163 = vor.u32 %v162, %v158
    %v164 = vrot.slane %v163, 4
    %v166 = vshll.u32 %v26, 16
    %v168 = vrot.slane %v166, 5
    %v169 = vsel %vm121, %v164, %v168
    %v171 = vshrl.u32 %v27, 16
    %v173 = vrot.slane %v171, 4
    %v174 = vshll.u32 %v27, 16
    %v176 = vrot.slane %v174, 5
    %v177 = vor.u32 %v173, %v176
    %v178 = vrot.slane %v177, 4
    %v180 = vshll.u32 %v28, 16
    %v182 = vrot.slane %v180, 5
    %v183 = vsel %vm121, %v178, %v182
    %v184 = vshrl.u32 %v28, 16
    %v186 = vrot.slane %v184, 4
    %v187 = vor.u32 %v186, %v182
    %v188 = vrot.slane %v187, 4
    %v190 = vshll.u32 %v29, 16
    %v192 = vrot.slane %v190, 5
    %v193 = vsel %vm121, %v188, %v192
    %v195 = vshrl.u32 %v30, 16
    %v197 = vrot.slane %v195, 4
    %v198 = vshll.u32 %v30, 16
    %v200 = vrot.slane %v198, 5
    %v201 = vor.u32 %v197, %v200
    %v202 = vrot.slane %v201, 4
    %v204 = vshll.u32 %v31, 16
    %v206 = vrot.slane %v204, 5
    %v207 = vsel %vm121, %v202, %v206
    %v208 = vshrl.u32 %v31, 16
    %v210 = vrot.slane %v208, 4
    %v211 = vor.u32 %v210, %v206
    %v212 = vrot.slane %v211, 4
    %v214 = vshll.u32 %v32, 16
    %v216 = vrot.slane %v214, 5
    %v217 = vsel %vm121, %v212, %v216
    %v219 = vshrl.u32 %v33, 16
    %v221 = vrot.slane %v219, 4
    %v222 = vshll.u32 %v33, 16
    %v224 = vrot.slane %v222, 5
    %v225 = vor.u32 %v221, %v224
    %v226 = vrot.slane %v225, 4
    %v228 = vshll.u32 %v34, 16
    %v230 = vrot.slane %v228, 5
    %v231 = vsel %vm121, %v226, %v230
    %v232 = vshrl.u32 %v34, 16
    %v234 = vrot.slane %v232, 4
    %v235 = vor.u32 %v234, %v230
    %v236 = vrot.slane %v235, 4
    %v238 = vshll.u32 %v35, 16
    %v240 = vrot.slane %v238, 5
    %v241 = vsel %vm121, %v236, %v240
    %v243 = vshrl.u32 %v36, 16
    %v245 = vrot.slane %v243, 4
    %v246 = vshll.u32 %v36, 16
    %v248 = vrot.slane %v246, 5
    %v249 = vor.u32 %v245, %v248
    %v250 = vrot.slane %v249, 4
    %v252 = vshll.u32 %v37, 16
    %v254 = vrot.slane %v252, 5
    %v255 = vsel %vm121, %v250, %v254
    %v256 = vshrl.u32 %v37, 16
    %v258 = vrot.slane %v256, 4
    %v259 = vor.u32 %v258, %v254
    %v260 = vrot.slane %v259, 4
    %v262 = vshll.u32 %v38, 16
    %v264 = vrot.slane %v262, 5
    %v265 = vsel %vm121, %v260, %v264
    %v267 = vshrl.u32 %v39, 16
    %v269 = vrot.slane %v267, 4
    %v270 = vshll.u32 %v39, 16
    %v272 = vrot.slane %v270, 5
    %v273 = vor.u32 %v269, %v272
    %v274 = vrot.slane %v273, 4
    %v276 = vshll.u32 %v40, 16
    %v278 = vrot.slane %v276, 5
    %v279 = vsel %vm121, %v274, %v278
    %v280 = vshrl.u32 %v40, 16
    %v282 = vrot.slane %v280, 4
    %v283 = vor.u32 %v282, %v278
    %v284 = vrot.slane %v283, 4
    %v286 = vshll.u32 %v41, 16
    %v288 = vrot.slane %v286, 5
    %v289 = vsel %vm121, %v284, %v288
    %v291 = vshrl.u32 %v42, 16
    %v293 = vrot.slane %v291, 4
    %v294 = vshll.u32 %v42, 16
    %v296 = vrot.slane %v294, 5
    %v297 = vor.u32 %v293, %v296
    %v298 = vrot.slane %v297, 4
    %v300 = vshll.u32 %v43, 16
    %v302 = vrot.slane %v300, 5
    %v303 = vsel %vm121, %v298, %v302
    %v304 = vshrl.u32 %v43, 16
    %v306 = vrot.slane %v304, 4
    %v307 = vor.u32 %v306, %v302
    %v308 = vrot.slane %v307, 4
    %v310 = vshll.u32 %v44, 16
    %v312 = vrot.slane %v310, 5
    %v313 = vsel %vm121, %v308, %v312
    %v315 = vshrl.u32 %v45, 16
    %v317 = vrot.slane %v315, 4
    %v318 = vshll.u32 %v45, 16
    %v320 = vrot.slane %v318, 5
    %v321 = vor.u32 %v317, %v320
    %v322 = vrot.slane %v321, 4
    %v324 = vshll.u32 %v46, 16
    %v326 = vrot.slane %v324, 5
    %v327 = vsel %vm121, %v322, %v326
    %v328 = vshrl.u32 %v46, 16
    %v330 = vrot.slane %v328, 4
    %v331 = vor.u32 %v330, %v326
    %v332 = vrot.slane %v331, 4
    %v334 = vshll.u32 %v47, 16
    %v336 = vrot.slane %v334, 5
    %v337 = vsel %vm121, %v332, %v336
    %v339 = vshrl.u32 %v48, 16
    %v341 = vrot.slane %v339, 4
    %v342 = vshll.u32 %v48, 16
    %v344 = vrot.slane %v342, 5
    %v345 = vor.u32 %v341, %v344
    %v346 = vrot.slane %v345, 4
    %v348 = vshll.u32 %v49, 16
    %v350 = vrot.slane %v348, 5
    %v351 = vsel %vm121, %v346, %v350
    %v352 = vshrl.u32 %v49, 16
    %v354 = vrot.slane %v352, 4
    %v355 = vor.u32 %v354, %v350
    %v356 = vrot.slane %v355, 4
    %v358 = vshll.u32 %v50, 16
    %v360 = vrot.slane %v358, 5
    %v361 = vsel %vm121, %v356, %v360
    %v363 = vshrl.u32 %v51, 16
    %v365 = vrot.slane %v363, 4
    %v366 = vshll.u32 %v51, 16
    %v368 = vrot.slane %v366, 5
    %v369 = vor.u32 %v365, %v368
    %v370 = vrot.slane %v369, 4
    %v372 = vshll.u32 %v52, 16
    %v374 = vrot.slane %v372, 5
    %v375 = vsel %vm121, %v370, %v374
    %v376 = vshrl.u32 %v52, 16
    %v378 = vrot.slane %v376, 4
    %v379 = vor.u32 %v378, %v374
    %v380 = vrot.slane %v379, 4
    %v382 = vshll.u32 %v53, 16
    %v384 = vrot.slane %v382, 5
    %v385 = vsel %vm121, %v380, %v384
    %v387 = vshrl.u32 %v54, 16
    %v389 = vrot.slane %v387, 4
    %v390 = vshll.u32 %v54, 16
    %v392 = vrot.slane %v390, 5
    %v393 = vor.u32 %v389, %v392
    %v394 = vrot.slane %v393, 4
    %v396 = vshll.u32 %v55, 16
    %v398 = vrot.slane %v396, 5
    %v399 = vsel %vm121, %v394, %v398
    %v400 = vshrl.u32 %v55, 16
    %v402 = vrot.slane %v400, 4
    %v403 = vor.u32 %v402, %v398
    %v404 = vrot.slane %v403, 4
    %v406 = vshll.u32 %v56, 16
    %v408 = vrot.slane %v406, 5
    %v409 = vsel %vm121, %v404, %v408
    %v411 = vshrl.u32 %v57, 16
    %v413 = vrot.slane %v411, 4
    %v414 = vshll.u32 %v57, 16
    %v416 = vrot.slane %v414, 5
    %v417 = vor.u32 %v413, %v416
    %v418 = vrot.slane %v417, 4
    %v420 = vshll.u32 %v58, 16
    %v422 = vrot.slane %v420, 5
    %v423 = vsel %vm121, %v418, %v422
    %v424 = vshrl.u32 %v58, 16
    %v426 = vrot.slane %v424, 4
    %v427 = vor.u32 %v426, %v422
    %v428 = vrot.slane %v427, 4
    %v430 = vshll.u32 %v59, 16
    %v432 = vrot.slane %v430, 5
    %v433 = vsel %vm121, %v428, %v432
    %v435 = vshrl.u32 %v60, 16
    %v437 = vrot.slane %v435, 4
    %v438 = vshll.u32 %v60, 16
    %v440 = vrot.slane %v438, 5
    %v441 = vor.u32 %v437, %v440
    %v442 = vrot.slane %v441, 4
    %v444 = vshll.u32 %v61, 16
    %v446 = vrot.slane %v444, 5
    %v447 = vsel %vm121, %v442, %v446
    %v448 = vshrl.u32 %v61, 16
    %v450 = vrot.slane %v448, 4
    %v451 = vor.u32 %v450, %v446
    %v452 = vrot.slane %v451, 4
    %v454 = vshll.u32 %v62, 16
    %v456 = vrot.slane %v454, 5
    %v457 = vsel %vm121, %v452, %v456
    %v459 = vshrl.u32 %v63, 16
    %v461 = vrot.slane %v459, 4
    %v462 = vshll.u32 %v63, 16
    %v464 = vrot.slane %v462, 5
    %v465 = vor.u32 %v461, %v464
    %v466 = vrot.slane %v465, 4
    %v468 = vshll.u32 %v64, 16
    %v470 = vrot.slane %v468, 5
    %v471 = vsel %vm121, %v466, %v470
    %v472 = vshrl.u32 %v64, 16
    %v474 = vrot.slane %v472, 4
    %v475 = vor.u32 %v474, %v470
    %v476 = vrot.slane %v475, 4
    %v478 = vshll.u32 %v65, 16
    %v480 = vrot.slane %v478, 5
    %v481 = vsel %vm121, %v476, %v480
    %v483 = vshrl.u32 %v66, 16
    %v485 = vrot.slane %v483, 4
    %v486 = vshll.u32 %v66, 16
    %v488 = vrot.slane %v486, 5
    %v489 = vor.u32 %v485, %v488
    %v490 = vrot.slane %v489, 4
    %v492 = vshll.u32 %v67, 16
    %v494 = vrot.slane %v492, 5
    %v495 = vsel %vm121, %v490, %v494
    %v496 = vshrl.u32 %v67, 16
    %v498 = vrot.slane %v496, 4
    %v499 = vor.u32 %v498, %v494
    %v500 = vrot.slane %v499, 4
    %v502 = vshll.u32 %v68, 16
    %v504 = vrot.slane %v502, 5
    %v505 = vsel %vm121, %v500, %v504
    %s506 = scalar_lea.vmem %s1, 4
    %v507 = vld [vmem:[%s506] sm:$0xf]
    %v508 = vunpack.c.l.b16 %v135
    %v509 = vunpack.c.l.b16 %v145
    %v510 = vunpack.c.l.b16 %v159
    %v511 = vunpack.c.l.b16 %v169
    %v512 = vunpack.c.l.b16 %v183
    %v513 = vunpack.c.l.b16 %v193
    %v514 = vunpack.c.l.b16 %v207
    %v515 = vunpack.c.l.b16 %v217
    %v516 = vunpack.c.l.b16 %v231
    %v517 = vunpack.c.l.b16 %v241
    %v518 = vunpack.c.l.b16 %v255
    %v519 = vunpack.c.l.b16 %v265
    %v520 = vunpack.c.l.b16 %v279
    %v521 = vunpack.c.l.b16 %v289
    %v522 = vunpack.c.l.b16 %v303
    %v523 = vunpack.c.l.b16 %v313
    %v524 = vunpack.c.l.b16 %v327
    %v525 = vunpack.c.l.b16 %v337
    %v526 = vunpack.c.l.b16 %v351
    %v527 = vunpack.c.l.b16 %v361
    %v528 = vunpack.c.l.b16 %v375
    %v529 = vunpack.c.l.b16 %v385
    %v530 = vunpack.c.l.b16 %v399
    %v531 = vunpack.c.l.b16 %v409
    %v532 = vunpack.c.l.b16 %v423
    %v533 = vunpack.c.l.b16 %v433
    %v534 = vunpack.c.l.b16 %v447
    %v535 = vunpack.c.l.b16 %v457
    %v536 = vunpack.c.l.b16 %v471
    %v537 = vunpack.c.l.b16 %v481
    %v538 = vunpack.c.l.b16 %v495
    %v539 = vunpack.c.l.b16 %v505
    %v540 = vpack.c.b16 %v509, %v508
    %v541 = vpack.c.b16 %v511, %v510
    %v542 = vpack.c.b16 %v513, %v512
    %v543 = vpack.c.b16 %v515, %v514
    %v544 = vpack.c.b16 %v517, %v516
    %v545 = vpack.c.b16 %v519, %v518
    %v546 = vpack.c.b16 %v521, %v520
    %v547 = vpack.c.b16 %v523, %v522
    %v548 = vpack.c.b16 %v525, %v524
    %v549 = vpack.c.b16 %v527, %v526
    %v550 = vpack.c.b16 %v529, %v528
    %v551 = vpack.c.b16 %v531, %v530
    %v552 = vpack.c.b16 %v533, %v532
    %v553 = vpack.c.b16 %v535, %v534
    %v554 = vpack.c.b16 %v537, %v536
    %v555 = vpack.c.b16 %v539, %v538
    %vm556 = vcmask 64512
    %v558 = vsel %vm556, %v540, 0
    %v561 = vsel %vm556, %v541, 0
    %v564 = vsel %vm556, %v542, 0
    %v567 = vsel %vm556, %v543, 0
    %v570 = vsel %vm556, %v544, 0
    %v573 = vsel %vm556, %v545, 0
    %v576 = vsel %vm556, %v546, 0
    %v579 = vsel %vm556, %v547, 0
    %v582 = vsel %vm556, %v548, 0
    %v585 = vsel %vm556, %v549, 0
    %v588 = vsel %vm556, %v550, 0
    %v591 = vsel %vm556, %v551, 0
    %v594 = vsel %vm556, %v552, 0
    %v597 = vsel %vm556, %v553, 0
    %v600 = vsel %vm556, %v554, 0
    %v603 = vsel %vm556, %v555, 0
    %vm605 = vcmask 1043456
    %v607 = vsel %vm605, %v507, 0
    %609 = vmatprep.subr.bf16.mxu0 0
    %610 = vmatpush1.bf16.msra.mxu0 %v607
    %611 = vmatprep.subr.bf16.mxu0 0
    %612 = vmatpush1.bf16.msra.mxu0 0
    %613 = vmatprep.subr.bf16.mxu0 0
    %614 = vmatpush1.bf16.msra.mxu0 0
    %615 = vmatprep.subr.bf16.mxu0 0
    %616 = vmatpush1.bf16.msra.mxu0 0
    %617 = vmatprep.subr.bf16.mxu0 0
    %618 = vmatpush1.bf16.msra.mxu0 0
    %619 = vmatprep.subr.bf16.mxu0 0
    %620 = vmatpush1.bf16.msra.mxu0 0
    %621 = vmatprep.subr.bf16.mxu0 0
    %622 = vmatpush1.bf16.msra.mxu0 0
    %623 = vmatprep.subr.bf16.mxu0 0
    %624 = vmatpush1.bf16.msra.mxu0 0
    %625 = vmatprep.subr.bf16.mxu0 0
    %626 = vmatpush1.bf16.msra.mxu0 0
    %627 = vmatprep.subr.bf16.mxu0 0
    %628 = vmatpush1.bf16.msra.mxu0 0
    %629 = vmatprep.subr.bf16.mxu0 0
    %630 = vmatpush1.bf16.msra.mxu0 0
    %631 = vmatprep.subr.bf16.mxu0 0
    %632 = vmatpush1.bf16.msra.mxu0 0
    %633 = vmatprep.subr.bf16.mxu0 0
    %634 = vmatpush1.bf16.msra.mxu0 0
    %635 = vmatprep.subr.bf16.mxu0 0
    %636 = vmatpush1.bf16.msra.mxu0 0
    %637 = vmatprep.subr.bf16.mxu0 0
    %638 = vmatpush1.bf16.msra.mxu0 0
    %639 = vmatprep.subr.bf16.mxu0 0
    %640 = vmatpush1.bf16.msra.mxu0 0
    %641 = vmatprep.mubr.bf16.mxu0 0
    %642 = vmatmul.mubr.bf16.gmra.mrb[0].mxu0 %v558
    %v643 = vpop.f32.mrb[0].mxu0
    %v644 = vadd.f32 0.0, %v643
    %v645 = vpop.f32.mrb[0].mxu0
    %v646 = vpop.f32.mrb[0].mxu0
    %v647 = vadd.f32 0.0, %v646
    %v648 = vpop.f32.mrb[0].mxu0
    %649 = vmatprep.mubr.bf16.mxu0 0
    %650 = vmatmul.mubr.bf16.gmra.mrb[0].mxu0 %v561
    %v651 = vpop.f32.mrb[0].mxu0
    %v652 = vadd.f32 0.0, %v651
    %v653 = vpop.f32.mrb[0].mxu0
    %v654 = vpop.f32.mrb[0].mxu0
    %v655 = vadd.f32 0.0, %v654
    %v656 = vpop.f32.mrb[0].mxu0
    %657 = vmatprep.mubr.bf16.mxu0 0
    %658 = vmatmul.mubr.bf16.gmra.mrb[0].mxu0 %v564
    %v659 = vpop.f32.mrb[0].mxu0
    %v660 = vadd.f32 0.0, %v659
    %v661 = vpop.f32.mrb[0].mxu0
    %v662 = vpop.f32.mrb[0].mxu0
    %v663 = vadd.f32 0.0, %v662
    %v664 = vpop.f32.mrb[0].mxu0
    %665 = vmatprep.mubr.bf16.mxu0 0
    %666 = vmatmul.mubr.bf16.gmra.mrb[0].mxu0 %v567
    %v667 = vpop.f32.mrb[0].mxu0
    %v668 = vadd.f32 0.0, %v667
    %v669 = vpop.f32.mrb[0].mxu0
    %v670 = vpop.f32.mrb[0].mxu0
    %v671 = vadd.f32 0.0, %v670
    %v672 = vpop.f32.mrb[0].mxu0
    %673 = vmatprep.mubr.bf16.mxu0 0
    %674 = vmatmul.mubr.bf16.gmra.mrb[0].mxu0 %v570
    %v675 = vpop.f32.mrb[0].mxu0
    %v676 = vadd.f32 0.0, %v675
    %v677 = vpop.f32.mrb[0].mxu0
    %v678 = vpop.f32.mrb[0].mxu0
    %v679 = vadd.f32 0.0, %v678
    %v680 = vpop.f32.mrb[0].mxu0
    %681 = vmatprep.mubr.bf16.mxu0 0
    %682 = vmatmul.mubr.bf16.gmra.mrb[0].mxu0 %v573
    %v683 = vpop.f32.mrb[0].mxu0
    %v684 = vadd.f32 0.0, %v683
    %v685 = vpop.f32.mrb[0].mxu0
    %v686 = vpop.f32.mrb[0].mxu0
    %v687 = vadd.f32 0.0, %v686
    %v688 = vpop.f32.mrb[0].mxu0
    %689 = vmatprep.mubr.bf16.mxu0 0
    %690 = vmatmul.mubr.bf16.gmra.mrb[0].mxu0 %v576
    %v691 = vpop.f32.mrb[0].mxu0
    %v692 = vadd.f32 0.0, %v691
    %v693 = vpop.f32.mrb[0].mxu0
    %v694 = vpop.f32.mrb[0].mxu0
    %v695 = vadd.f32 0.0, %v694
    %v696 = vpop.f32.mrb[0].mxu0
    %697 = vmatprep.mubr.bf16.mxu0 0
    %698 = vmatmul.mubr.bf16.gmra.mrb[0].mxu0 %v579
    %v699 = vpop.f32.mrb[0].mxu0
    %v700 = vadd.f32 0.0, %v699
    %v701 = vpop.f32.mrb[0].mxu0
    %v702 = vpop.f32.mrb[0].mxu0
    %v703 = vadd.f32 0.0, %v702
    %v704 = vpop.f32.mrb[0].mxu0
    %705 = vmatprep.mubr.bf16.mxu0 0
    %706 = vmatmul.mubr.bf16.gmra.mrb[0].mxu0 %v582
    %v707 = vpop.f32.mrb[0].mxu0
    %v708 = vadd.f32 0.0, %v707
    %v709 = vpop.f32.mrb[0].mxu0
    %v710 = vpop.f32.mrb[0].mxu0
    %v711 = vadd.f32 0.0, %v710
    %v712 = vpop.f32.mrb[0].mxu0
    %713 = vmatprep.mubr.bf16.mxu0 0
    %714 = vmatmul.mubr.bf16.gmra.mrb[0].mxu0 %v585
    %v715 = vpop.f32.mrb[0].mxu0
    %v716 = vadd.f32 0.0, %v715
    %v717 = vpop.f32.mrb[0].mxu0
    %v718 = vpop.f32.mrb[0].mxu0
    %v719 = vadd.f32 0.0, %v718
    %v720 = vpop.f32.mrb[0].mxu0
    %721 = vmatprep.mubr.bf16.mxu0 0
    %722 = vmatmul.mubr.bf16.gmra.mrb[0].mxu0 %v588
    %v723 = vpop.f32.mrb[0].mxu0
    %v724 = vadd.f32 0.0, %v723
    %v725 = vpop.f32.mrb[0].mxu0
    %v726 = vpop.f32.mrb[0].mxu0
    %v727 = vadd.f32 0.0, %v726
    %v728 = vpop.f32.mrb[0].mxu0
    %729 = vmatprep.mubr.bf16.mxu0 0
    %730 = vmatmul.mubr.bf16.gmra.mrb[0].mxu0 %v591
    %v731 = vpop.f32.mrb[0].mxu0
    %v732 = vadd.f32 0.0, %v731
    %v733 = vpop.f32.mrb[0].mxu0
    %v734 = vpop.f32.mrb[0].mxu0
    %v735 = vadd.f32 0.0, %v734
    %v736 = vpop.f32.mrb[0].mxu0
    %737 = vmatprep.mubr.bf16.mxu0 0
    %738 = vmatmul.mubr.bf16.gmra.mrb[0].mxu0 %v594
    %v739 = vpop.f32.mrb[0].mxu0
    %v740 = vadd.f32 0.0, %v739
    %v741 = vpop.f32.mrb[0].mxu0
    %v742 = vpop.f32.mrb[0].mxu0
    %v743 = vadd.f32 0.0, %v742
    %v744 = vpop.f32.mrb[0].mxu0
    %745 = vmatprep.mubr.bf16.mxu0 0
    %746 = vmatmul.mubr.bf16.gmra.mrb[0].mxu0 %v597
    %v747 = vpop.f32.mrb[0].mxu0
    %v748 = vadd.f32 0.0, %v747
    %v749 = vpop.f32.mrb[0].mxu0
    %v750 = vpop.f32.mrb[0].mxu0
    %v751 = vadd.f32 0.0, %v750
    %v752 = vpop.f32.mrb[0].mxu0
    %753 = vmatprep.mubr.bf16.mxu0 0
    %754 = vmatmul.mubr.bf16.gmra.mrb[0].mxu0 %v600
    %v755 = vpop.f32.mrb[0].mxu0
    %v756 = vadd.f32 0.0, %v755
    %v757 = vpop.f32.mrb[0].mxu0
    %v758 = vpop.f32.mrb[0].mxu0
    %v759 = vadd.f32 0.0, %v758
    %v760 = vpop.f32.mrb[0].mxu0
    %761 = vmatprep.mubr.bf16.mxu0 0
    %762 = vmatmul.mubr.bf16.gmra.mrb[0].mxu0 %v603
    %v763 = vpop.f32.mrb[0].mxu0
    %v764 = vadd.f32 0.0, %v763
    %v765 = vpop.f32.mrb[0].mxu0
    %v766 = vpop.f32.mrb[0].mxu0
    %v767 = vadd.f32 0.0, %v766
    %v768 = vpop.f32.mrb[0].mxu0
    %769 = vdwg.mxu0
    %v802 = vunpack.c.l.b16 %v21
    %v803 = vunpack.c.l.b16 %v22
    %v804 = vunpack.c.l.b16 %v24
    %v805 = vunpack.c.l.b16 %v25
    %v806 = vunpack.c.l.b16 %v27
    %v807 = vunpack.c.l.b16 %v28
    %v808 = vunpack.c.l.b16 %v30
    %v809 = vunpack.c.l.b16 %v31
    %v810 = vunpack.c.l.b16 %v33
    %v811 = vunpack.c.l.b16 %v34
    %v812 = vunpack.c.l.b16 %v36
    %v813 = vunpack.c.l.b16 %v37
    %v814 = vunpack.c.l.b16 %v39
    %v815 = vunpack.c.l.b16 %v40
    %v816 = vunpack.c.l.b16 %v42
    %v817 = vunpack.c.l.b16 %v43
    %v818 = vunpack.c.l.b16 %v45
    %v819 = vunpack.c.l.b16 %v46
    %v820 = vunpack.c.l.b16 %v48
    %v821 = vunpack.c.l.b16 %v49
    %v822 = vunpack.c.l.b16 %v51
    %v823 = vunpack.c.l.b16 %v52
    %v824 = vunpack.c.l.b16 %v54
    %v825 = vunpack.c.l.b16 %v55
    %v826 = vunpack.c.l.b16 %v57
    %v827 = vunpack.c.l.b16 %v58
    %v828 = vunpack.c.l.b16 %v60
    %v829 = vunpack.c.l.b16 %v61
    %v830 = vunpack.c.l.b16 %v63
    %v831 = vunpack.c.l.b16 %v64
    %v832 = vunpack.c.l.b16 %v66
    %v833 = vunpack.c.l.b16 %v67
    %v834 = vpack.c.b16 %v803, %v802
    %v835 = vpack.c.b16 %v805, %v804
    %v836 = vpack.c.b16 %v807, %v806
    %v837 = vpack.c.b16 %v809, %v808
    %v838 = vpack.c.b16 %v811, %v810
    %v839 = vpack.c.b16 %v813, %v812
    %v840 = vpack.c.b16 %v815, %v814
    %v841 = vpack.c.b16 %v817, %v816
    %v842 = vpack.c.b16 %v819, %v818
    %v843 = vpack.c.b16 %v821, %v820
    %v844 = vpack.c.b16 %v823, %v822
    %v845 = vpack.c.b16 %v825, %v824
    %v846 = vpack.c.b16 %v827, %v826
    %v847 = vpack.c.b16 %v829, %v828
    %v848 = vpack.c.b16 %v831, %v830
    %v849 = vpack.c.b16 %v833, %v832
    %v851 = vsel %vm556, %v834, 0
    %v854 = vsel %vm556, %v835, 0
    %v857 = vsel %vm556, %v836, 0
    %v860 = vsel %vm556, %v837, 0
    %v863 = vsel %vm556, %v838, 0
    %v866 = vsel %vm556, %v839, 0
    %v869 = vsel %vm556, %v840, 0
    %v872 = vsel %vm556, %v841, 0
    %v875 = vsel %vm556, %v842, 0
    %v878 = vsel %vm556, %v843, 0
    %v881 = vsel %vm556, %v844, 0
    %v884 = vsel %vm556, %v845, 0
    %v887 = vsel %vm556, %v846, 0
    %v890 = vsel %vm556, %v847, 0
    %v893 = vsel %vm556, %v848, 0
    %v896 = vsel %vm556, %v849, 0
    %v899 = vsel %vm605, %v118, 0
    %901 = vmatprep.subr.bf16.mxu0 0
    %902 = vmatpush1.bf16.msra.mxu0 %v899
    %903 = vmatprep.subr.bf16.mxu0 0
    %904 = vmatpush1.bf16.msra.mxu0 0
    %905 = vmatprep.subr.bf16.mxu0 0
    %906 = vmatpush1.bf16.msra.mxu0 0
    %907 = vmatprep.subr.bf16.mxu0 0
    %908 = vmatpush1.bf16.msra.mxu0 0
    %909 = vmatprep.subr.bf16.mxu0 0
    %910 = vmatpush1.bf16.msra.mxu0 0
    %911 = vmatprep.subr.bf16.mxu0 0
    %912 = vmatpush1.bf16.msra.mxu0 0
    %913 = vmatprep.subr.bf16.mxu0 0
    %914 = vmatpush1.bf16.msra.mxu0 0
    %915 = vmatprep.subr.bf16.mxu0 0
    %916 = vmatpush1.bf16.msra.mxu0 0
    %917 = vmatprep.subr.bf16.mxu0 0
    %918 = vmatpush1.bf16.msra.mxu0 0
    %919 = vmatprep.subr.bf16.mxu0 0
    %920 = vmatpush1.bf16.msra.mxu0 0
    %921 = vmatprep.subr.bf16.mxu0 0
    %922 = vmatpush1.bf16.msra.mxu0 0
    %923 = vmatprep.subr.bf16.mxu0 0
    %924 = vmatpush1.bf16.msra.mxu0 0
    %925 = vmatprep.subr.bf16.mxu0 0
    %926 = vmatpush1.bf16.msra.mxu0 0
    %927 = vmatprep.subr.bf16.mxu0 0
    %928 = vmatpush1.bf16.msra.mxu0 0
    %929 = vmatprep.subr.bf16.mxu0 0
    %930 = vmatpush1.bf16.msra.mxu0 0
    %931 = vmatprep.subr.bf16.mxu0 0
    %932 = vmatpush1.bf16.msra.mxu0 0
    %933 = vmatprep.mubr.bf16.mxu0 0
    %934 = vmatmul.mubr.bf16.gmra.mrb[0].mxu0 %v851
    %v935 = vpop.f32.mrb[0].mxu0
    %v936 = vadd.f32 %v644, %v935
    %v937 = vpop.f32.mrb[0].mxu0
    %v938 = vpop.f32.mrb[0].mxu0
    %v939 = vadd.f32 %v647, %v938
    %v940 = vpop.f32.mrb[0].mxu0
    %941 = vmatprep.mubr.bf16.mxu0 0
    %942 = vmatmul.mubr.bf16.gmra.mrb[0].mxu0 %v854
    %v943 = vpop.f32.mrb[0].mxu0
    %v944 = vadd.f32 %v652, %v943
    %v945 = vpop.f32.mrb[0].mxu0
    %v946 = vpop.f32.mrb[0].mxu0
    %v947 = vadd.f32 %v655, %v946
    %v948 = vpop.f32.mrb[0].mxu0
    %949 = vmatprep.mubr.bf16.mxu0 0
    %950 = vmatmul.mubr.bf16.gmra.mrb[0].mxu0 %v857
    %v951 = vpop.f32.mrb[0].mxu0
    %v952 = vadd.f32 %v660, %v951
    %v953 = vpop.f32.mrb[0].mxu0
    %v954 = vpop.f32.mrb[0].mxu0
    %v955 = vadd.f32 %v663, %v954
    %v956 = vpop.f32.mrb[0].mxu0
    %957 = vmatprep.mubr.bf16.mxu0 0
    %958 = vmatmul.mubr.bf16.gmra.mrb[0].mxu0 %v860
    %v959 = vpop.f32.mrb[0].mxu0
    %v960 = vadd.f32 %v668, %v959
    %v961 = vpop.f32.mrb[0].mxu0
    %v962 = vpop.f32.mrb[0].mxu0
    %v963 = vadd.f32 %v671, %v962
    %v964 = vpop.f32.mrb[0].mxu0
    %965 = vmatprep.mubr.bf16.mxu0 0
    %966 = vmatmul.mubr.bf16.gmra.mrb[0].mxu0 %v863
    %v967 = vpop.f32.mrb[0].mxu0
    %v968 = vadd.f32 %v676, %v967
    %v969 = vpop.f32.mrb[0].mxu0
    %v970 = vpop.f32.mrb[0].mxu0
    %v971 = vadd.f32 %v679, %v970
    %v972 = vpop.f32.mrb[0].mxu0
    %973 = vmatprep.mubr.bf16.mxu0 0
    %974 = vmatmul.mubr.bf16.gmra.mrb[0].mxu0 %v866
    %v975 = vpop.f32.mrb[0].mxu0
    %v976 = vadd.f32 %v684, %v975
    %v977 = vpop.f32.mrb[0].mxu0
    %v978 = vpop.f32.mrb[0].mxu0
    %v979 = vadd.f32 %v687, %v978
    %v980 = vpop.f32.mrb[0].mxu0
    %981 = vmatprep.mubr.bf16.mxu0 0
    %982 = vmatmul.mubr.bf16.gmra.mrb[0].mxu0 %v869
    %v983 = vpop.f32.mrb[0].mxu0
    %v984 = vadd.f32 %v692, %v983
    %v985 = vpop.f32.mrb[0].mxu0
    %v986 = vpop.f32.mrb[0].mxu0
    %v987 = vadd.f32 %v695, %v986
    %v988 = vpop.f32.mrb[0].mxu0
    %989 = vmatprep.mubr.bf16.mxu0 0
    %990 = vmatmul.mubr.bf16.gmra.mrb[0].mxu0 %v872
    %v991 = vpop.f32.mrb[0].mxu0
    %v992 = vadd.f32 %v700, %v991
    %v993 = vpop.f32.mrb[0].mxu0
    %v994 = vpop.f32.mrb[0].mxu0
    %v995 = vadd.f32 %v703, %v994
    %v996 = vpop.f32.mrb[0].mxu0
    %997 = vmatprep.mubr.bf16.mxu0 0
    %998 = vmatmul.mubr.bf16.gmra.mrb[0].mxu0 %v875
    %v999 = vpop.f32.mrb[0].mxu0
    %v1000 = vadd.f32 %v708, %v999
    %v1001 = vpop.f32.mrb[0].mxu0
    %v1002 = vpop.f32.mrb[0].mxu0
    %v1003 = vadd.f32 %v711, %v1002
    %v1004 = vpop.f32.mrb[0].mxu0
    %1005 = vmatprep.mubr.bf16.mxu0 0
    %1006 = vmatmul.mubr.bf16.gmra.mrb[0].mxu0 %v878
    %v1007 = vpop.f32.mrb[0].mxu0
    %v1008 = vadd.f32 %v716, %v1007
    %v1009 = vpop.f32.mrb[0].mxu0
    %v1010 = vpop.f32.mrb[0].mxu0
    %v1011 = vadd.f32 %v719, %v1010
    %v1012 = vpop.f32.mrb[0].mxu0
    %1013 = vmatprep.mubr.bf16.mxu0 0
    %1014 = vmatmul.mubr.bf16.gmra.mrb[0].mxu0 %v881
    %v1015 = vpop.f32.mrb[0].mxu0
    %v1016 = vadd.f32 %v724, %v1015
    %v1017 = vpop.f32.mrb[0].mxu0
    %v1018 = vpop.f32.mrb[0].mxu0
    %v1019 = vadd.f32 %v727, %v1018
    %v1020 = vpop.f32.mrb[0].mxu0
    %1021 = vmatprep.mubr.bf16.mxu0 0
    %1022 = vmatmul.mubr.bf16.gmra.mrb[0].mxu0 %v884
    %v1023 = vpop.f32.mrb[0].mxu0
    %v1024 = vadd.f32 %v732, %v1023
    %v1025 = vpop.f32.mrb[0].mxu0
    %v1026 = vpop.f32.mrb[0].mxu0
    %v1027 = vadd.f32 %v735, %v1026
    %v1028 = vpop.f32.mrb[0].mxu0
    %1029 = vmatprep.mubr.bf16.mxu0 0
    %1030 = vmatmul.mubr.bf16.gmra.mrb[0].mxu0 %v887
    %v1031 = vpop.f32.mrb[0].mxu0
    %v1032 = vadd.f32 %v740, %v1031
    %v1033 = vpop.f32.mrb[0].mxu0
    %v1034 = vpop.f32.mrb[0].mxu0
    %v1035 = vadd.f32 %v743, %v1034
    %v1036 = vpop.f32.mrb[0].mxu0
    %1037 = vmatprep.mubr.bf16.mxu0 0
    %1038 = vmatmul.mubr.bf16.gmra.mrb[0].mxu0 %v890
    %v1039 = vpop.f32.mrb[0].mxu0
    %v1040 = vadd.f32 %v748, %v1039
    %v1041 = vpop.f32.mrb[0].mxu0
    %v1042 = vpop.f32.mrb[0].mxu0
    %v1043 = vadd.f32 %v751, %v1042
    %v1044 = vpop.f32.mrb[0].mxu0
    %1045 = vmatprep.mubr.bf16.mxu0 0
    %1046 = vmatmul.mubr.bf16.gmra.mrb[0].mxu0 %v893
    %v1047 = vpop.f32.mrb[0].mxu0
    %v1048 = vadd.f32 %v756, %v1047
    %v1049 = vpop.f32.mrb[0].mxu0
    %v1050 = vpop.f32.mrb[0].mxu0
    %v1051 = vadd.f32 %v759, %v1050
    %v1052 = vpop.f32.mrb[0].mxu0
    %1053 = vmatprep.mubr.bf16.mxu0 0
    %1054 = vmatmul.mubr.bf16.gmra.mrb[0].mxu0 %v896
    %v1055 = vpop.f32.mrb[0].mxu0
    %v1056 = vadd.f32 %v764, %v1055
    %v1057 = vpop.f32.mrb[0].mxu0
    %v1058 = vpop.f32.mrb[0].mxu0
    %v1059 = vadd.f32 %v767, %v1058
    %v1060 = vpop.f32.mrb[0].mxu0
    %1061 = vdwg.mxu0
    %s1062 = scalar_lea.vmem %s1, 8
    %v1063 = vld [vmem:[%s1062] sm:$0xf]
    %v1096 = vunpack.c.l.b16 %v70
    %v1097 = vunpack.c.l.b16 %v71
    %v1098 = vunpack.c.l.b16 %v73
    %v1099 = vunpack.c.l.b16 %v74
    %v1100 = vunpack.c.l.b16 %v76
    %v1101 = vunpack.c.l.b16 %v77
    %v1102 = vunpack.c.l.b16 %v79
    %v1103 = vunpack.c.l.b16 %v80
    %v1104 = vunpack.c.l.b16 %v82
    %v1105 = vunpack.c.l.b16 %v83
    %v1106 = vunpack.c.l.b16 %v85
    %v1107 = vunpack.c.l.b16 %v86
    %v1108 = vunpack.c.l.b16 %v88
    %v1109 = vunpack.c.l.b16 %v89
    %v1110 = vunpack.c.l.b16 %v91
    %v1111 = vunpack.c.l.b16 %v92
    %v1112 = vunpack.c.l.b16 %v94
    %v1113 = vunpack.c.l.b16 %v95
    %v1114 = vunpack.c.l.b16 %v97
    %v1115 = vunpack.c.l.b16 %v98
    %v1116 = vunpack.c.l.b16 %v100
    %v1117 = vunpack.c.l.b16 %v101
    %v1118 = vunpack.c.l.b16 %v103
    %v1119 = vunpack.c.l.b16 %v104
    %v1120 = vunpack.c.l.b16 %v106
    %v1121 = vunpack.c.l.b16 %v107
    %v1122 = vunpack.c.l.b16 %v109
    %v1123 = vunpack.c.l.b16 %v110
    %v1124 = vunpack.c.l.b16 %v112
    %v1125 = vunpack.c.l.b16 %v113
    %v1126 = vunpack.c.l.b16 %v115
    %v1127 = vunpack.c.l.b16 %v116
    %v1128 = vpack.c.b16 %v1097, %v1096
    %v1129 = vpack.c.b16 %v1099, %v1098
    %v1130 = vpack.c.b16 %v1101, %v1100
    %v1131 = vpack.c.b16 %v1103, %v1102
    %v1132 = vpack.c.b16 %v1105, %v1104
    %v1133 = vpack.c.b16 %v1107, %v1106
    %v1134 = vpack.c.b16 %v1109, %v1108
    %v1135 = vpack.c.b16 %v1111, %v1110
    %v1136 = vpack.c.b16 %v1113, %v1112
    %v1137 = vpack.c.b16 %v1115, %v1114
    %v1138 = vpack.c.b16 %v1117, %v1116
    %v1139 = vpack.c.b16 %v1119, %v1118
    %v1140 = vpack.c.b16 %v1121, %v1120
    %v1141 = vpack.c.b16 %v1123, %v1122
    %v1142 = vpack.c.b16 %v1125, %v1124
    %v1143 = vpack.c.b16 %v1127, %v1126
    %v1145 = vsel %vm556, %v1128, 0
    %v1148 = vsel %vm556, %v1129, 0
    %v1151 = vsel %vm556, %v1130, 0
    %v1154 = vsel %vm556, %v1131, 0
    %v1157 = vsel %vm556, %v1132, 0
    %v1160 = vsel %vm556, %v1133, 0
    %v1163 = vsel %vm556, %v1134, 0
    %v1166 = vsel %vm556, %v1135, 0
    %v1169 = vsel %vm556, %v1136, 0
    %v1172 = vsel %vm556, %v1137, 0
    %v1175 = vsel %vm556, %v1138, 0
    %v1178 = vsel %vm556, %v1139, 0
    %v1181 = vsel %vm556, %v1140, 0
    %v1184 = vsel %vm556, %v1141, 0
    %v1187 = vsel %vm556, %v1142, 0
    %v1190 = vsel %vm556, %v1143, 0
    %v1193 = vsel %vm605, %v1063, 0
    %1195 = vmatprep.subr.bf16.mxu0 0
    %1196 = vmatpush1.bf16.msra.mxu0 %v1193
    %1197 = vmatprep.subr.bf16.mxu0 0
    %1198 = vmatpush1.bf16.msra.mxu0 0
    %1199 = vmatprep.subr.bf16.mxu0 0
    %1200 = vmatpush1.bf16.msra.mxu0 0
    %1201 = vmatprep.subr.bf16.mxu0 0
    %1202 = vmatpush1.bf16.msra.mxu0 0
    %1203 = vmatprep.subr.bf16.mxu0 0
    %1204 = vmatpush1.bf16.msra.mxu0 0
    %1205 = vmatprep.subr.bf16.mxu0 0
    %1206 = vmatpush1.bf16.msra.mxu0 0
    %1207 = vmatprep.subr.bf16.mxu0 0
    %1208 = vmatpush1.bf16.msra.mxu0 0
    %1209 = vmatprep.subr.bf16.mxu0 0
    %1210 = vmatpush1.bf16.msra.mxu0 0
    %1211 = vmatprep.subr.bf16.mxu0 0
    %1212 = vmatpush1.bf16.msra.mxu0 0
    %1213 = vmatprep.subr.bf16.mxu0 0
    %1214 = vmatpush1.bf16.msra.mxu0 0
    %1215 = vmatprep.subr.bf16.mxu0 0
    %1216 = vmatpush1.bf16.msra.mxu0 0
    %1217 = vmatprep.subr.bf16.mxu0 0
    %1218 = vmatpush1.bf16.msra.mxu0 0
    %1219 = vmatprep.subr.bf16.mxu0 0
    %1220 = vmatpush1.bf16.msra.mxu0 0
    %1221 = vmatprep.subr.bf16.mxu0 0
    %1222 = vmatpush1.bf16.msra.mxu0 0
    %1223 = vmatprep.subr.bf16.mxu0 0
    %1224 = vmatpush1.bf16.msra.mxu0 0
    %1225 = vmatprep.subr.bf16.mxu0 0
    %1226 = vmatpush1.bf16.msra.mxu0 0
    %1227 = vmatprep.mubr.bf16.mxu0 0
    %1228 = vmatmul.mubr.bf16.gmra.mrb[0].mxu0 %v1145
    %v1229 = vpop.f32.mrb[0].mxu0
    %v1230 = vadd.f32 0.0, %v1229
    %v1231 = vpop.f32.mrb[0].mxu0
    %v1232 = vpop.f32.mrb[0].mxu0
    %v1233 = vadd.f32 0.0, %v1232
    %v1234 = vpop.f32.mrb[0].mxu0
    %1235 = vmatprep.mubr.bf16.mxu0 0
    %1236 = vmatmul.mubr.bf16.gmra.mrb[0].mxu0 %v1148
    %v1237 = vpop.f32.mrb[0].mxu0
    %v1238 = vadd.f32 0.0, %v1237
    %v1239 = vpop.f32.mrb[0].mxu0
    %v1240 = vpop.f32.mrb[0].mxu0
    %v1241 = vadd.f32 0.0, %v1240
    %v1242 = vpop.f32.mrb[0].mxu0
    %1243 = vmatprep.mubr.bf16.mxu0 0
    %1244 = vmatmul.mubr.bf16.gmra.mrb[0].mxu0 %v1151
    %v1245 = vpop.f32.mrb[0].mxu0
    %v1246 = vadd.f32 0.0, %v1245
    %v1247 = vpop.f32.mrb[0].mxu0
    %v1248 = vpop.f32.mrb[0].mxu0
    %v1249 = vadd.f32 0.0, %v1248
    %v1250 = vpop.f32.mrb[0].mxu0
    %1251 = vmatprep.mubr.bf16.mxu0 0
    %1252 = vmatmul.mubr.bf16.gmra.mrb[0].mxu0 %v1154
    %v1253 = vpop.f32.mrb[0].mxu0
    %v1254 = vadd.f32 0.0, %v1253
    %v1255 = vpop.f32.mrb[0].mxu0
    %v1256 = vpop.f32.mrb[0].mxu0
    %v1257 = vadd.f32 0.0, %v1256
    %v1258 = vpop.f32.mrb[0].mxu0
    %1259 = vmatprep.mubr.bf16.mxu0 0
    %1260 = vmatmul.mubr.bf16.gmra.mrb[0].mxu0 %v1157
    %v1261 = vpop.f32.mrb[0].mxu0
    %v1262 = vadd.f32 0.0, %v1261
    %v1263 = vpop.f32.mrb[0].mxu0
    %v1264 = vpop.f32.mrb[0].mxu0
    %v1265 = vadd.f32 0.0, %v1264
    %v1266 = vpop.f32.mrb[0].mxu0
    %1267 = vmatprep.mubr.bf16.mxu0 0
    %1268 = vmatmul.mubr.bf16.gmra.mrb[0].mxu0 %v1160
    %v1269 = vpop.f32.mrb[0].mxu0
    %v1270 = vadd.f32 0.0, %v1269
    %v1271 = vpop.f32.mrb[0].mxu0
    %v1272 = vpop.f32.mrb[0].mxu0
    %v1273 = vadd.f32 0.0, %v1272
    %v1274 = vpop.f32.mrb[0].mxu0
    %1275 = vmatprep.mubr.bf16.mxu0 0
    %1276 = vmatmul.mubr.bf16.gmra.mrb[0].mxu0 %v1163
    %v1277 = vpop.f32.mrb[0].mxu0
    %v1278 = vadd.f32 0.0, %v1277
    %v1279 = vpop.f32.mrb[0].mxu0
    %v1280 = vpop.f32.mrb[0].mxu0
    %v1281 = vadd.f32 0.0, %v1280
    %v1282 = vpop.f32.mrb[0].mxu0
    %1283 = vmatprep.mubr.bf16.mxu0 0
    %1284 = vmatmul.mubr.bf16.gmra.mrb[0].mxu0 %v1166
    %v1285 = vpop.f32.mrb[0].mxu0
    %v1286 = vadd.f32 0.0, %v1285
    %v1287 = vpop.f32.mrb[0].mxu0
    %v1288 = vpop.f32.mrb[0].mxu0
    %v1289 = vadd.f32 0.0, %v1288
    %v1290 = vpop.f32.mrb[0].mxu0
    %1291 = vmatprep.mubr.bf16.mxu0 0
    %1292 = vmatmul.mubr.bf16.gmra.mrb[0].mxu0 %v1169
    %v1293 = vpop.f32.mrb[0].mxu0
    %v1294 = vadd.f32 0.0, %v1293
    %v1295 = vpop.f32.mrb[0].mxu0
    %v1296 = vpop.f32.mrb[0].mxu0
    %v1297 = vadd.f32 0.0, %v1296
    %v1298 = vpop.f32.mrb[0].mxu0
    %1299 = vmatprep.mubr.bf16.mxu0 0
    %1300 = vmatmul.mubr.bf16.gmra.mrb[0].mxu0 %v1172
    %v1301 = vpop.f32.mrb[0].mxu0
    %v1302 = vadd.f32 0.0, %v1301
    %v1303 = vpop.f32.mrb[0].mxu0
    %v1304 = vpop.f32.mrb[0].mxu0
    %v1305 = vadd.f32 0.0, %v1304
    %v1306 = vpop.f32.mrb[0].mxu0
    %1307 = vmatprep.mubr.bf16.mxu0 0
    %1308 = vmatmul.mubr.bf16.gmra.mrb[0].mxu0 %v1175
    %v1309 = vpop.f32.mrb[0].mxu0
    %v1310 = vadd.f32 0.0, %v1309
    %v1311 = vpop.f32.mrb[0].mxu0
    %v1312 = vpop.f32.mrb[0].mxu0
    %v1313 = vadd.f32 0.0, %v1312
    %v1314 = vpop.f32.mrb[0].mxu0
    %1315 = vmatprep.mubr.bf16.mxu0 0
    %1316 = vmatmul.mubr.bf16.gmra.mrb[0].mxu0 %v1178
    %v1317 = vpop.f32.mrb[0].mxu0
    %v1318 = vadd.f32 0.0, %v1317
    %v1319 = vpop.f32.mrb[0].mxu0
    %v1320 = vpop.f32.mrb[0].mxu0
    %v1321 = vadd.f32 0.0, %v1320
    %v1322 = vpop.f32.mrb[0].mxu0
    %1323 = vmatprep.mubr.bf16.mxu0 0
    %1324 = vmatmul.mubr.bf16.gmra.mrb[0].mxu0 %v1181
    %v1325 = vpop.f32.mrb[0].mxu0
    %v1326 = vadd.f32 0.0, %v1325
    %v1327 = vpop.f32.mrb[0].mxu0
    %v1328 = vpop.f32.mrb[0].mxu0
    %v1329 = vadd.f32 0.0, %v1328
    %v1330 = vpop.f32.mrb[0].mxu0
    %1331 = vmatprep.mubr.bf16.mxu0 0
    %1332 = vmatmul.mubr.bf16.gmra.mrb[0].mxu0 %v1184
    %v1333 = vpop.f32.mrb[0].mxu0
    %v1334 = vadd.f32 0.0, %v1333
    %v1335 = vpop.f32.mrb[0].mxu0
    %v1336 = vpop.f32.mrb[0].mxu0
    %v1337 = vadd.f32 0.0, %v1336
    %v1338 = vpop.f32.mrb[0].mxu0
    %1339 = vmatprep.mubr.bf16.mxu0 0
    %1340 = vmatmul.mubr.bf16.gmra.mrb[0].mxu0 %v1187
    %v1341 = vpop.f32.mrb[0].mxu0
    %v1342 = vadd.f32 0.0, %v1341
    %v1343 = vpop.f32.mrb[0].mxu0
    %v1344 = vpop.f32.mrb[0].mxu0
    %v1345 = vadd.f32 0.0, %v1344
    %v1346 = vpop.f32.mrb[0].mxu0
    %1347 = vmatprep.mubr.bf16.mxu0 0
    %1348 = vmatmul.mubr.bf16.gmra.mrb[0].mxu0 %v1190
    %v1349 = vpop.f32.mrb[0].mxu0
    %v1350 = vadd.f32 0.0, %v1349
    %v1351 = vpop.f32.mrb[0].mxu0
    %v1352 = vpop.f32.mrb[0].mxu0
    %v1353 = vadd.f32 0.0, %v1352
    %v1354 = vpop.f32.mrb[0].mxu0
    %1355 = vdwg.mxu0
    %v1356 = vadd.f32 %v936, %v1230
    %v1357 = vadd.f32 %v939, %v1233
    %v1358 = vadd.f32 %v944, %v1238
    %v1359 = vadd.f32 %v947, %v1241
    %v1360 = vadd.f32 %v952, %v1246
    %v1361 = vadd.f32 %v955, %v1249
    %v1362 = vadd.f32 %v960, %v1254
    %v1363 = vadd.f32 %v963, %v1257
    %v1364 = vadd.f32 %v968, %v1262
    %v1365 = vadd.f32 %v971, %v1265
    %v1366 = vadd.f32 %v976, %v1270
    %v1367 = vadd.f32 %v979, %v1273
    %v1368 = vadd.f32 %v984, %v1278
    %v1369 = vadd.f32 %v987, %v1281
    %v1370 = vadd.f32 %v992, %v1286
    %v1371 = vadd.f32 %v995, %v1289
    %v1372 = vadd.f32 %v1000, %v1294
    %v1373 = vadd.f32 %v1003, %v1297
    %v1374 = vadd.f32 %v1008, %v1302
    %v1375 = vadd.f32 %v1011, %v1305
    %v1376 = vadd.f32 %v1016, %v1310
    %v1377 = vadd.f32 %v1019, %v1313
    %v1378 = vadd.f32 %v1024, %v1318
    %v1379 = vadd.f32 %v1027, %v1321
    %v1380 = vadd.f32 %v1032, %v1326
    %v1381 = vadd.f32 %v1035, %v1329
    %v1382 = vadd.f32 %v1040, %v1334
    %v1383 = vadd.f32 %v1043, %v1337
    %v1384 = vadd.f32 %v1048, %v1342
    %v1385 = vadd.f32 %v1051, %v1345
    %v1386 = vadd.f32 %v1056, %v1350
    %v1387 = vadd.f32 %v1059, %v1353
    %v1389 = vshrl.u32 %v70, 16
    %v1391 = vrot.slane %v1389, 4
    %v1392 = vshll.u32 %v70, 16
    %v1394 = vrot.slane %v1392, 5
    %v1395 = vor.u32 %v1391, %v1394
    %v1396 = vrot.slane %v1395, 4
    %v1398 = vshll.u32 %v71, 16
    %v1400 = vrot.slane %v1398, 5
    %v1401 = vsel %vm121, %v1396, %v1400
    %v1402 = vshrl.u32 %v71, 16
    %v1404 = vrot.slane %v1402, 4
    %v1405 = vor.u32 %v1404, %v1400
    %v1406 = vrot.slane %v1405, 4
    %v1408 = vshll.u32 %v72, 16
    %v1410 = vrot.slane %v1408, 5
    %v1411 = vsel %vm121, %v1406, %v1410
    %v1413 = vshrl.u32 %v73, 16
    %v1415 = vrot.slane %v1413, 4
    %v1416 = vshll.u32 %v73, 16
    %v1418 = vrot.slane %v1416, 5
    %v1419 = vor.u32 %v1415, %v1418
    %v1420 = vrot.slane %v1419, 4
    %v1422 = vshll.u32 %v74, 16
    %v1424 = vrot.slane %v1422, 5
    %v1425 = vsel %vm121, %v1420, %v1424
    %v1426 = vshrl.u32 %v74, 16
    %v1428 = vrot.slane %v1426, 4
    %v1429 = vor.u32 %v1428, %v1424
    %v1430 = vrot.slane %v1429, 4
    %v1432 = vshll.u32 %v75, 16
    %v1434 = vrot.slane %v1432, 5
    %v1435 = vsel %vm121, %v1430, %v1434
    %v1437 = vshrl.u32 %v76, 16
    %v1439 = vrot.slane %v1437, 4
    %v1440 = vshll.u32 %v76, 16
    %v1442 = vrot.slane %v1440, 5
    %v1443 = vor.u32 %v1439, %v1442
    %v1444 = vrot.slane %v1443, 4
    %v1446 = vshll.u32 %v77, 16
    %v1448 = vrot.slane %v1446, 5
    %v1449 = vsel %vm121, %v1444, %v1448
    %v1450 = vshrl.u32 %v77, 16
    %v1452 = vrot.slane %v1450, 4
    %v1453 = vor.u32 %v1452, %v1448
    %v1454 = vrot.slane %v1453, 4
    %v1456 = vshll.u32 %v78, 16
    %v1458 = vrot.slane %v1456, 5
    %v1459 = vsel %vm121, %v1454, %v1458
    %v1461 = vshrl.u32 %v79, 16
    %v1463 = vrot.slane %v1461, 4
    %v1464 = vshll.u32 %v79, 16
    %v1466 = vrot.slane %v1464, 5
    %v1467 = vor.u32 %v1463, %v1466
    %v1468 = vrot.slane %v1467, 4
    %v1470 = vshll.u32 %v80, 16
    %v1472 = vrot.slane %v1470, 5
    %v1473 = vsel %vm121, %v1468, %v1472
    %v1474 = vshrl.u32 %v80, 16
    %v1476 = vrot.slane %v1474, 4
    %v1477 = vor.u32 %v1476, %v1472
    %v1478 = vrot.slane %v1477, 4
    %v1480 = vshll.u32 %v81, 16
    %v1482 = vrot.slane %v1480, 5
    %v1483 = vsel %vm121, %v1478, %v1482
    %v1485 = vshrl.u32 %v82, 16
    %v1487 = vrot.slane %v1485, 4
    %v1488 = vshll.u32 %v82, 16
    %v1490 = vrot.slane %v1488, 5
    %v1491 = vor.u32 %v1487, %v1490
    %v1492 = vrot.slane %v1491, 4
    %v1494 = vshll.u32 %v83, 16
    %v1496 = vrot.slane %v1494, 5
    %v1497 = vsel %vm121, %v1492, %v1496
    %v1498 = vshrl.u32 %v83, 16
    %v1500 = vrot.slane %v1498, 4
    %v1501 = vor.u32 %v1500, %v1496
    %v1502 = vrot.slane %v1501, 4
    %v1504 = vshll.u32 %v84, 16
    %v1506 = vrot.slane %v1504, 5
    %v1507 = vsel %vm121, %v1502, %v1506
    %v1509 = vshrl.u32 %v85, 16
    %v1511 = vrot.slane %v1509, 4
    %v1512 = vshll.u32 %v85, 16
    %v1514 = vrot.slane %v1512, 5
    %v1515 = vor.u32 %v1511, %v1514
    %v1516 = vrot.slane %v1515, 4
    %v1518 = vshll.u32 %v86, 16
    %v1520 = vrot.slane %v1518, 5
    %v1521 = vsel %vm121, %v1516, %v1520
    %v1522 = vshrl.u32 %v86, 16
    %v1524 = vrot.slane %v1522, 4
    %v1525 = vor.u32 %v1524, %v1520
    %v1526 = vrot.slane %v1525, 4
    %v1528 = vshll.u32 %v87, 16
    %v1530 = vrot.slane %v1528, 5
    %v1531 = vsel %vm121, %v1526, %v1530
    %v1533 = vshrl.u32 %v88, 16
    %v1535 = vrot.slane %v1533, 4
    %v1536 = vshll.u32 %v88, 16
    %v1538 = vrot.slane %v1536, 5
    %v1539 = vor.u32 %v1535, %v1538
    %v1540 = vrot.slane %v1539, 4
    %v1542 = vshll.u32 %v89, 16
    %v1544 = vrot.slane %v1542, 5
    %v1545 = vsel %vm121, %v1540, %v1544
    %v1546 = vshrl.u32 %v89, 16
    %v1548 = vrot.slane %v1546, 4
    %v1549 = vor.u32 %v1548, %v1544
    %v1550 = vrot.slane %v1549, 4
    %v1552 = vshll.u32 %v90, 16
    %v1554 = vrot.slane %v1552, 5
    %v1555 = vsel %vm121, %v1550, %v1554
    %v1557 = vshrl.u32 %v91, 16
    %v1559 = vrot.slane %v1557, 4
    %v1560 = vshll.u32 %v91, 16
    %v1562 = vrot.slane %v1560, 5
    %v1563 = vor.u32 %v1559, %v1562
    %v1564 = vrot.slane %v1563, 4
    %v1566 = vshll.u32 %v92, 16
    %v1568 = vrot.slane %v1566, 5
    %v1569 = vsel %vm121, %v1564, %v1568
    %v1570 = vshrl.u32 %v92, 16
    %v1572 = vrot.slane %v1570, 4
    %v1573 = vor.u32 %v1572, %v1568
    %v1574 = vrot.slane %v1573, 4
    %v1576 = vshll.u32 %v93, 16
    %v1578 = vrot.slane %v1576, 5
    %v1579 = vsel %vm121, %v1574, %v1578
    %v1581 = vshrl.u32 %v94, 16
    %v1583 = vrot.slane %v1581, 4
    %v1584 = vshll.u32 %v94, 16
    %v1586 = vrot.slane %v1584, 5
    %v1587 = vor.u32 %v1583, %v1586
    %v1588 = vrot.slane %v1587, 4
    %v1590 = vshll.u32 %v95, 16
    %v1592 = vrot.slane %v1590, 5
    %v1593 = vsel %vm121, %v1588, %v1592
    %v1594 = vshrl.u32 %v95, 16
    %v1596 = vrot.slane %v1594, 4
    %v1597 = vor.u32 %v1596, %v1592
    %v1598 = vrot.slane %v1597, 4
    %v1600 = vshll.u32 %v96, 16
    %v1602 = vrot.slane %v1600, 5
    %v1603 = vsel %vm121, %v1598, %v1602
    %v1605 = vshrl.u32 %v97, 16
    %v1607 = vrot.slane %v1605, 4
    %v1608 = vshll.u32 %v97, 16
    %v1610 = vrot.slane %v1608, 5
    %v1611 = vor.u32 %v1607, %v1610
    %v1612 = vrot.slane %v1611, 4
    %v1614 = vshll.u32 %v98, 16
    %v1616 = vrot.slane %v1614, 5
    %v1617 = vsel %vm121, %v1612, %v1616
    %v1618 = vshrl.u32 %v98, 16
    %v1620 = vrot.slane %v1618, 4
    %v1621 = vor.u32 %v1620, %v1616
    %v1622 = vrot.slane %v1621, 4
    %v1624 = vshll.u32 %v99, 16
    %v1626 = vrot.slane %v1624, 5
    %v1627 = vsel %vm121, %v1622, %v1626
    %v1629 = vshrl.u32 %v100, 16
    %v1631 = vrot.slane %v1629, 4
    %v1632 = vshll.u32 %v100, 16
    %v1634 = vrot.slane %v1632, 5
    %v1635 = vor.u32 %v1631, %v1634
    %v1636 = vrot.slane %v1635, 4
    %v1638 = vshll.u32 %v101, 16
    %v1640 = vrot.slane %v1638, 5
    %v1641 = vsel %vm121, %v1636, %v1640
    %v1642 = vshrl.u32 %v101, 16
    %v1644 = vrot.slane %v1642, 4
    %v1645 = vor.u32 %v1644, %v1640
    %v1646 = vrot.slane %v1645, 4
    %v1648 = vshll.u32 %v102, 16
    %v1650 = vrot.slane %v1648, 5
    %v1651 = vsel %vm121, %v1646, %v1650
    %v1653 = vshrl.u32 %v103, 16
    %v1655 = vrot.slane %v1653, 4
    %v1656 = vshll.u32 %v103, 16
    %v1658 = vrot.slane %v1656, 5
    %v1659 = vor.u32 %v1655, %v1658
    %v1660 = vrot.slane %v1659, 4
    %v1662 = vshll.u32 %v104, 16
    %v1664 = vrot.slane %v1662, 5
    %v1665 = vsel %vm121, %v1660, %v1664
    %v1666 = vshrl.u32 %v104, 16
    %v1668 = vrot.slane %v1666, 4
    %v1669 = vor.u32 %v1668, %v1664
    %v1670 = vrot.slane %v1669, 4
    %v1672 = vshll.u32 %v105, 16
    %v1674 = vrot.slane %v1672, 5
    %v1675 = vsel %vm121, %v1670, %v1674
    %v1677 = vshrl.u32 %v106, 16
    %v1679 = vrot.slane %v1677, 4
    %v1680 = vshll.u32 %v106, 16
    %v1682 = vrot.slane %v1680, 5
    %v1683 = vor.u32 %v1679, %v1682
    %v1684 = vrot.slane %v1683, 4
    %v1686 = vshll.u32 %v107, 16
    %v1688 = vrot.slane %v1686, 5
    %v1689 = vsel %vm121, %v1684, %v1688
    %v1690 = vshrl.u32 %v107, 16
    %v1692 = vrot.slane %v1690, 4
    %v1693 = vor.u32 %v1692, %v1688
    %v1694 = vrot.slane %v1693, 4
    %v1696 = vshll.u32 %v108, 16
    %v1698 = vrot.slane %v1696, 5
    %v1699 = vsel %vm121, %v1694, %v1698
    %v1701 = vshrl.u32 %v109, 16
    %v1703 = vrot.slane %v1701, 4
    %v1704 = vshll.u32 %v109, 16
    %v1706 = vrot.slane %v1704, 5
    %v1707 = vor.u32 %v1703, %v1706
    %v1708 = vrot.slane %v1707, 4
    %v1710 = vshll.u32 %v110, 16
    %v1712 = vrot.slane %v1710, 5
    %v1713 = vsel %vm121, %v1708, %v1712
    %v1714 = vshrl.u32 %v110, 16
    %v1716 = vrot.slane %v1714, 4
    %v1717 = vor.u32 %v1716, %v1712
    %v1718 = vrot.slane %v1717, 4
    %v1720 = vshll.u32 %v111, 16
    %v1722 = vrot.slane %v1720, 5
    %v1723 = vsel %vm121, %v1718, %v1722
    %v1725 = vshrl.u32 %v112, 16
    %v1727 = vrot.slane %v1725, 4
    %v1728 = vshll.u32 %v112, 16
    %v1730 = vrot.slane %v1728, 5
    %v1731 = vor.u32 %v1727, %v1730
    %v1732 = vrot.slane %v1731, 4
    %v1734 = vshll.u32 %v113, 16
    %v1736 = vrot.slane %v1734, 5
    %v1737 = vsel %vm121, %v1732, %v1736
    %v1738 = vshrl.u32 %v113, 16
    %v1740 = vrot.slane %v1738, 4
    %v1741 = vor.u32 %v1740, %v1736
    %v1742 = vrot.slane %v1741, 4
    %v1744 = vshll.u32 %v114, 16
    %v1746 = vrot.slane %v1744, 5
    %v1747 = vsel %vm121, %v1742, %v1746
    %v1749 = vshrl.u32 %v115, 16
    %v1751 = vrot.slane %v1749, 4
    %v1752 = vshll.u32 %v115, 16
    %v1754 = vrot.slane %v1752, 5
    %v1755 = vor.u32 %v1751, %v1754
    %v1756 = vrot.slane %v1755, 4
    %v1758 = vshll.u32 %v116, 16
    %v1760 = vrot.slane %v1758, 5
    %v1761 = vsel %vm121, %v1756, %v1760
    %v1762 = vshrl.u32 %v116, 16
    %v1764 = vrot.slane %v1762, 4
    %v1765 = vor.u32 %v1764, %v1760
    %v1766 = vrot.slane %v1765, 4
    %v1768 = vshll.u32 %v117, 16
    %v1770 = vrot.slane %v1768, 5
    %v1771 = vsel %vm121, %v1766, %v1770
    %s1772 = scalar_lea.vmem %s1, 12
    %v1773 = vld [vmem:[%s1772] sm:$0xf]
    %v1774 = vunpack.c.l.b16 %v1401
    %v1775 = vunpack.c.l.b16 %v1411
    %v1776 = vunpack.c.l.b16 %v1425
    %v1777 = vunpack.c.l.b16 %v1435
    %v1778 = vunpack.c.l.b16 %v1449
    %v1779 = vunpack.c.l.b16 %v1459
    %v1780 = vunpack.c.l.b16 %v1473
    %v1781 = vunpack.c.l.b16 %v1483
    %v1782 = vunpack.c.l.b16 %v1497
    %v1783 = vunpack.c.l.b16 %v1507
    %v1784 = vunpack.c.l.b16 %v1521
    %v1785 = vunpack.c.l.b16 %v1531
    %v1786 = vunpack.c.l.b16 %v1545
    %v1787 = vunpack.c.l.b16 %v1555
    %v1788 = vunpack.c.l.b16 %v1569
    %v1789 = vunpack.c.l.b16 %v1579
    %v1790 = vunpack.c.l.b16 %v1593
    %v1791 = vunpack.c.l.b16 %v1603
    %v1792 = vunpack.c.l.b16 %v1617
    %v1793 = vunpack.c.l.b16 %v1627
    %v1794 = vunpack.c.l.b16 %v1641
    %v1795 = vunpack.c.l.b16 %v1651
    %v1796 = vunpack.c.l.b16 %v1665
    %v1797 = vunpack.c.l.b16 %v1675
    %v1798 = vunpack.c.l.b16 %v1689
    %v1799 = vunpack.c.l.b16 %v1699
    %v1800 = vunpack.c.l.b16 %v1713
    %v1801 = vunpack.c.l.b16 %v1723
    %v1802 = vunpack.c.l.b16 %v1737
    %v1803 = vunpack.c.l.b16 %v1747
    %v1804 = vunpack.c.l.b16 %v1761
    %v1805 = vunpack.c.l.b16 %v1771
    %v1806 = vpack.c.b16 %v1775, %v1774
    %v1807 = vpack.c.b16 %v1777, %v1776
    %v1808 = vpack.c.b16 %v1779, %v1778
    %v1809 = vpack.c.b16 %v1781, %v1780
    %v1810 = vpack.c.b16 %v1783, %v1782
    %v1811 = vpack.c.b16 %v1785, %v1784
    %v1812 = vpack.c.b16 %v1787, %v1786
    %v1813 = vpack.c.b16 %v1789, %v1788
    %v1814 = vpack.c.b16 %v1791, %v1790
    %v1815 = vpack.c.b16 %v1793, %v1792
    %v1816 = vpack.c.b16 %v1795, %v1794
    %v1817 = vpack.c.b16 %v1797, %v1796
    %v1818 = vpack.c.b16 %v1799, %v1798
    %v1819 = vpack.c.b16 %v1801, %v1800
    %v1820 = vpack.c.b16 %v1803, %v1802
    %v1821 = vpack.c.b16 %v1805, %v1804
    %v1823 = vsel %vm556, %v1806, 0
    %v1826 = vsel %vm556, %v1807, 0
    %v1829 = vsel %vm556, %v1808, 0
    %v1832 = vsel %vm556, %v1809, 0
    %v1835 = vsel %vm556, %v1810, 0
    %v1838 = vsel %vm556, %v1811, 0
    %v1841 = vsel %vm556, %v1812, 0
    %v1844 = vsel %vm556, %v1813, 0
    %v1847 = vsel %vm556, %v1814, 0
    %v1850 = vsel %vm556, %v1815, 0
    %v1853 = vsel %vm556, %v1816, 0
    %v1856 = vsel %vm556, %v1817, 0
    %v1859 = vsel %vm556, %v1818, 0
    %v1862 = vsel %vm556, %v1819, 0
    %v1865 = vsel %vm556, %v1820, 0
    %v1868 = vsel %vm556, %v1821, 0
    %v1871 = vsel %vm605, %v1773, 0
    %1873 = vmatprep.subr.bf16.mxu0 0
    %1874 = vmatpush1.bf16.msra.mxu0 %v1871
    %1875 = vmatprep.subr.bf16.mxu0 0
    %1876 = vmatpush1.bf16.msra.mxu0 0
    %1877 = vmatprep.subr.bf16.mxu0 0
    %1878 = vmatpush1.bf16.msra.mxu0 0
    %1879 = vmatprep.subr.bf16.mxu0 0
    %1880 = vmatpush1.bf16.msra.mxu0 0
    %1881 = vmatprep.subr.bf16.mxu0 0
    %1882 = vmatpush1.bf16.msra.mxu0 0
    %1883 = vmatprep.subr.bf16.mxu0 0
    %1884 = vmatpush1.bf16.msra.mxu0 0
    %1885 = vmatprep.subr.bf16.mxu0 0
    %1886 = vmatpush1.bf16.msra.mxu0 0
    %1887 = vmatprep.subr.bf16.mxu0 0
    %1888 = vmatpush1.bf16.msra.mxu0 0
    %1889 = vmatprep.subr.bf16.mxu0 0
    %1890 = vmatpush1.bf16.msra.mxu0 0
    %1891 = vmatprep.subr.bf16.mxu0 0
    %1892 = vmatpush1.bf16.msra.mxu0 0
    %1893 = vmatprep.subr.bf16.mxu0 0
    %1894 = vmatpush1.bf16.msra.mxu0 0
    %1895 = vmatprep.subr.bf16.mxu0 0
    %1896 = vmatpush1.bf16.msra.mxu0 0
    %1897 = vmatprep.subr.bf16.mxu0 0
    %1898 = vmatpush1.bf16.msra.mxu0 0
    %1899 = vmatprep.subr.bf16.mxu0 0
    %1900 = vmatpush1.bf16.msra.mxu0 0
    %1901 = vmatprep.subr.bf16.mxu0 0
    %1902 = vmatpush1.bf16.msra.mxu0 0
    %1903 = vmatprep.subr.bf16.mxu0 0
    %1904 = vmatpush1.bf16.msra.mxu0 0
    %1905 = vmatprep.mubr.bf16.mxu0 0
    %1906 = vmatmul.mubr.bf16.gmra.mrb[0].mxu0 %v1823
    %v1907 = vpop.f32.mrb[0].mxu0
    %v1908 = vadd.f32 0.0, %v1907
    %v1909 = vpop.f32.mrb[0].mxu0
    %v1910 = vpop.f32.mrb[0].mxu0
    %v1911 = vadd.f32 0.0, %v1910
    %v1912 = vpop.f32.mrb[0].mxu0
    %1913 = vmatprep.mubr.bf16.mxu0 0
    %1914 = vmatmul.mubr.bf16.gmra.mrb[0].mxu0 %v1826
    %v1915 = vpop.f32.mrb[0].mxu0
    %v1916 = vadd.f32 0.0, %v1915
    %v1917 = vpop.f32.mrb[0].mxu0
    %v1918 = vpop.f32.mrb[0].mxu0
    %v1919 = vadd.f32 0.0, %v1918
    %v1920 = vpop.f32.mrb[0].mxu0
    %1921 = vmatprep.mubr.bf16.mxu0 0
    %1922 = vmatmul.mubr.bf16.gmra.mrb[0].mxu0 %v1829
    %v1923 = vpop.f32.mrb[0].mxu0
    %v1924 = vadd.f32 0.0, %v1923
    %v1925 = vpop.f32.mrb[0].mxu0
    %v1926 = vpop.f32.mrb[0].mxu0
    %v1927 = vadd.f32 0.0, %v1926
    %v1928 = vpop.f32.mrb[0].mxu0
    %1929 = vmatprep.mubr.bf16.mxu0 0
    %1930 = vmatmul.mubr.bf16.gmra.mrb[0].mxu0 %v1832
    %v1931 = vpop.f32.mrb[0].mxu0
    %v1932 = vadd.f32 0.0, %v1931
    %v1933 = vpop.f32.mrb[0].mxu0
    %v1934 = vpop.f32.mrb[0].mxu0
    %v1935 = vadd.f32 0.0, %v1934
    %v1936 = vpop.f32.mrb[0].mxu0
    %1937 = vmatprep.mubr.bf16.mxu0 0
    %1938 = vmatmul.mubr.bf16.gmra.mrb[0].mxu0 %v1835
    %v1939 = vpop.f32.mrb[0].mxu0
    %v1940 = vadd.f32 0.0, %v1939
    %v1941 = vpop.f32.mrb[0].mxu0
    %v1942 = vpop.f32.mrb[0].mxu0
    %v1943 = vadd.f32 0.0, %v1942
    %v1944 = vpop.f32.mrb[0].mxu0
    %1945 = vmatprep.mubr.bf16.mxu0 0
    %1946 = vmatmul.mubr.bf16.gmra.mrb[0].mxu0 %v1838
    %v1947 = vpop.f32.mrb[0].mxu0
    %v1948 = vadd.f32 0.0, %v1947
    %v1949 = vpop.f32.mrb[0].mxu0
    %v1950 = vpop.f32.mrb[0].mxu0
    %v1951 = vadd.f32 0.0, %v1950
    %v1952 = vpop.f32.mrb[0].mxu0
    %1953 = vmatprep.mubr.bf16.mxu0 0
    %1954 = vmatmul.mubr.bf16.gmra.mrb[0].mxu0 %v1841
    %v1955 = vpop.f32.mrb[0].mxu0
    %v1956 = vadd.f32 0.0, %v1955
    %v1957 = vpop.f32.mrb[0].mxu0
    %v1958 = vpop.f32.mrb[0].mxu0
    %v1959 = vadd.f32 0.0, %v1958
    %v1960 = vpop.f32.mrb[0].mxu0
    %1961 = vmatprep.mubr.bf16.mxu0 0
    %1962 = vmatmul.mubr.bf16.gmra.mrb[0].mxu0 %v1844
    %v1963 = vpop.f32.mrb[0].mxu0
    %v1964 = vadd.f32 0.0, %v1963
    %v1965 = vpop.f32.mrb[0].mxu0
    %v1966 = vpop.f32.mrb[0].mxu0
    %v1967 = vadd.f32 0.0, %v1966
    %v1968 = vpop.f32.mrb[0].mxu0
    %1969 = vmatprep.mubr.bf16.mxu0 0
    %1970 = vmatmul.mubr.bf16.gmra.mrb[0].mxu0 %v1847
    %v1971 = vpop.f32.mrb[0].mxu0
    %v1972 = vadd.f32 0.0, %v1971
    %v1973 = vpop.f32.mrb[0].mxu0
    %v1974 = vpop.f32.mrb[0].mxu0
    %v1975 = vadd.f32 0.0, %v1974
    %v1976 = vpop.f32.mrb[0].mxu0
    %1977 = vmatprep.mubr.bf16.mxu0 0
    %1978 = vmatmul.mubr.bf16.gmra.mrb[0].mxu0 %v1850
    %v1979 = vpop.f32.mrb[0].mxu0
    %v1980 = vadd.f32 0.0, %v1979
    %v1981 = vpop.f32.mrb[0].mxu0
    %v1982 = vpop.f32.mrb[0].mxu0
    %v1983 = vadd.f32 0.0, %v1982
    %v1984 = vpop.f32.mrb[0].mxu0
    %1985 = vmatprep.mubr.bf16.mxu0 0
    %1986 = vmatmul.mubr.bf16.gmra.mrb[0].mxu0 %v1853
    %v1987 = vpop.f32.mrb[0].mxu0
    %v1988 = vadd.f32 0.0, %v1987
    %v1989 = vpop.f32.mrb[0].mxu0
    %v1990 = vpop.f32.mrb[0].mxu0
    %v1991 = vadd.f32 0.0, %v1990
    %v1992 = vpop.f32.mrb[0].mxu0
    %1993 = vmatprep.mubr.bf16.mxu0 0
    %1994 = vmatmul.mubr.bf16.gmra.mrb[0].mxu0 %v1856
    %v1995 = vpop.f32.mrb[0].mxu0
    %v1996 = vadd.f32 0.0, %v1995
    %v1997 = vpop.f32.mrb[0].mxu0
    %v1998 = vpop.f32.mrb[0].mxu0
    %v1999 = vadd.f32 0.0, %v1998
    %v2000 = vpop.f32.mrb[0].mxu0
    %2001 = vmatprep.mubr.bf16.mxu0 0
    %2002 = vmatmul.mubr.bf16.gmra.mrb[0].mxu0 %v1859
    %v2003 = vpop.f32.mrb[0].mxu0
    %v2004 = vadd.f32 0.0, %v2003
    %v2005 = vpop.f32.mrb[0].mxu0
    %v2006 = vpop.f32.mrb[0].mxu0
    %v2007 = vadd.f32 0.0, %v2006
    %v2008 = vpop.f32.mrb[0].mxu0
    %2009 = vmatprep.mubr.bf16.mxu0 0
    %2010 = vmatmul.mubr.bf16.gmra.mrb[0].mxu0 %v1862
    %v2011 = vpop.f32.mrb[0].mxu0
    %v2012 = vadd.f32 0.0, %v2011
    %v2013 = vpop.f32.mrb[0].mxu0
    %v2014 = vpop.f32.mrb[0].mxu0
    %v2015 = vadd.f32 0.0, %v2014
    %v2016 = vpop.f32.mrb[0].mxu0
    %2017 = vmatprep.mubr.bf16.mxu0 0
    %2018 = vmatmul.mubr.bf16.gmra.mrb[0].mxu0 %v1865
    %v2019 = vpop.f32.mrb[0].mxu0
    %v2020 = vadd.f32 0.0, %v2019
    %v2021 = vpop.f32.mrb[0].mxu0
    %v2022 = vpop.f32.mrb[0].mxu0
    %v2023 = vadd.f32 0.0, %v2022
    %v2024 = vpop.f32.mrb[0].mxu0
    %2025 = vmatprep.mubr.bf16.mxu0 0
    %2026 = vmatmul.mubr.bf16.gmra.mrb[0].mxu0 %v1868
    %v2027 = vpop.f32.mrb[0].mxu0
    %v2028 = vadd.f32 0.0, %v2027
    %v2029 = vpop.f32.mrb[0].mxu0
    %v2030 = vpop.f32.mrb[0].mxu0
    %v2031 = vadd.f32 0.0, %v2030
    %v2032 = vpop.f32.mrb[0].mxu0
    %2033 = vdwg.mxu0
    %v2034 = vadd.f32 %v1356, %v1908
    %v2035 = vadd.f32 %v1357, %v1911
    %v2036 = vadd.f32 %v1358, %v1916
    %v2037 = vadd.f32 %v1359, %v1919
    %v2038 = vadd.f32 %v1360, %v1924
    %v2039 = vadd.f32 %v1361, %v1927
    %v2040 = vadd.f32 %v1362, %v1932
    %v2041 = vadd.f32 %v1363, %v1935
    %v2042 = vadd.f32 %v1364, %v1940
    %v2043 = vadd.f32 %v1365, %v1943
    %v2044 = vadd.f32 %v1366, %v1948
    %v2045 = vadd.f32 %v1367, %v1951
    %v2046 = vadd.f32 %v1368, %v1956
    %v2047 = vadd.f32 %v1369, %v1959
    %v2048 = vadd.f32 %v1370, %v1964
    %v2049 = vadd.f32 %v1371, %v1967
    %v2050 = vadd.f32 %v1372, %v1972
    %v2051 = vadd.f32 %v1373, %v1975
    %v2052 = vadd.f32 %v1374, %v1980
    %v2053 = vadd.f32 %v1375, %v1983
    %v2054 = vadd.f32 %v1376, %v1988
    %v2055 = vadd.f32 %v1377, %v1991
    %v2056 = vadd.f32 %v1378, %v1996
    %v2057 = vadd.f32 %v1379, %v1999
    %v2058 = vadd.f32 %v1380, %v2004
    %v2059 = vadd.f32 %v1381, %v2007
    %v2060 = vadd.f32 %v1382, %v2012
    %v2061 = vadd.f32 %v1383, %v2015
    %v2062 = vadd.f32 %v1384, %v2020
    %v2063 = vadd.f32 %v1385, %v2023
    %v2064 = vadd.f32 %v1386, %v2028
    %v2065 = vadd.f32 %v1387, %v2031
    %v2067 = vlaneseq
    %v2068 = vshrl.u32 %v2067, 7
    %v2069 = vsub.s32 0, %v2068
    %v2070 = vrot.slane %v19, %v2069
    %v2072 = vmul.f32 %v2034, %v2070
    %v2073 = vmul.f32 %v2035, %v2070
    %v2074 = vmul.f32 %v2036, %v2070
    %v2075 = vmul.f32 %v2037, %v2070
    %v2076 = vmul.f32 %v2038, %v2070
    %v2077 = vmul.f32 %v2039, %v2070
    %v2078 = vmul.f32 %v2040, %v2070
    %v2079 = vmul.f32 %v2041, %v2070
    %v2080 = vmul.f32 %v2042, %v2070
    %v2081 = vmul.f32 %v2043, %v2070
    %v2082 = vmul.f32 %v2044, %v2070
    %v2083 = vmul.f32 %v2045, %v2070
    %v2084 = vmul.f32 %v2046, %v2070
    %v2085 = vmul.f32 %v2047, %v2070
    %v2086 = vmul.f32 %v2048, %v2070
    %v2087 = vmul.f32 %v2049, %v2070
    %v2088 = vmul.f32 %v2050, %v2070
    %v2089 = vmul.f32 %v2051, %v2070
    %v2090 = vmul.f32 %v2052, %v2070
    %v2091 = vmul.f32 %v2053, %v2070
    %v2092 = vmul.f32 %v2054, %v2070
    %v2093 = vmul.f32 %v2055, %v2070
    %v2094 = vmul.f32 %v2056, %v2070
    %v2095 = vmul.f32 %v2057, %v2070
    %v2096 = vmul.f32 %v2058, %v2070
    %v2097 = vmul.f32 %v2059, %v2070
    %v2098 = vmul.f32 %v2060, %v2070
    %v2099 = vmul.f32 %v2061, %v2070
    %v2100 = vmul.f32 %v2062, %v2070
    %v2101 = vmul.f32 %v2063, %v2070
    %v2102 = vmul.f32 %v2064, %v2070
    %v2103 = vmul.f32 %v2065, %v2070
    %v2105 = vlaneseq
    %v2106 = vshrl.u32 %v2105, 7
    %v2107 = vsub.s32 0, %v2106
    %v2108 = vrot.slane %v20, %v2107
    %v2110 = vadd.f32 %v2072, %v2108
    %v2111 = vadd.f32 %v2073, %v2108
    %v2112 = vadd.f32 %v2074, %v2108
    %v2113 = vadd.f32 %v2075, %v2108
    %v2114 = vadd.f32 %v2076, %v2108
    %v2115 = vadd.f32 %v2077, %v2108
    %v2116 = vadd.f32 %v2078, %v2108
    %v2117 = vadd.f32 %v2079, %v2108
    %v2118 = vadd.f32 %v2080, %v2108
    %v2119 = vadd.f32 %v2081, %v2108
    %v2120 = vadd.f32 %v2082, %v2108
    %v2121 = vadd.f32 %v2083, %v2108
    %v2122 = vadd.f32 %v2084, %v2108
    %v2123 = vadd.f32 %v2085, %v2108
    %v2124 = vadd.f32 %v2086, %v2108
    %v2125 = vadd.f32 %v2087, %v2108
    %v2126 = vadd.f32 %v2088, %v2108
    %v2127 = vadd.f32 %v2089, %v2108
    %v2128 = vadd.f32 %v2090, %v2108
    %v2129 = vadd.f32 %v2091, %v2108
    %v2130 = vadd.f32 %v2092, %v2108
    %v2131 = vadd.f32 %v2093, %v2108
    %v2132 = vadd.f32 %v2094, %v2108
    %v2133 = vadd.f32 %v2095, %v2108
    %v2134 = vadd.f32 %v2096, %v2108
    %v2135 = vadd.f32 %v2097, %v2108
    %v2136 = vadd.f32 %v2098, %v2108
    %v2137 = vadd.f32 %v2099, %v2108
    %v2138 = vadd.f32 %v2100, %v2108
    %v2139 = vadd.f32 %v2101, %v2108
    %v2140 = vadd.f32 %v2102, %v2108
    %v2141 = vadd.f32 %v2103, %v2108
    %v2142 = vpack.c.bf16 %v2111, %v2110
    %v2143 = vpack.c.bf16 %v2113, %v2112
    %v2144 = vpack.c.bf16 %v2115, %v2114
    %v2145 = vpack.c.bf16 %v2117, %v2116
    %v2146 = vpack.c.bf16 %v2119, %v2118
    %v2147 = vpack.c.bf16 %v2121, %v2120
    %v2148 = vpack.c.bf16 %v2123, %v2122
    %v2149 = vpack.c.bf16 %v2125, %v2124
    %v2150 = vpack.c.bf16 %v2127, %v2126
    %v2151 = vpack.c.bf16 %v2129, %v2128
    %v2152 = vpack.c.bf16 %v2131, %v2130
    %v2153 = vpack.c.bf16 %v2133, %v2132
    %v2154 = vpack.c.bf16 %v2135, %v2134
    %v2155 = vpack.c.bf16 %v2137, %v2136
    %v2156 = vpack.c.bf16 %v2139, %v2138
    %v2157 = vpack.c.bf16 %v2141, %v2140
    %v2174 = vunpack.c.l.b16 %v2142
    %v2175 = vunpack.c.h.b16 %v2142
    %v2176 = vunpack.c.l.b16 %v2143
    %v2177 = vunpack.c.h.b16 %v2143
    %v2178 = vunpack.c.l.b16 %v2144
    %v2179 = vunpack.c.h.b16 %v2144
    %v2180 = vunpack.c.l.b16 %v2145
    %v2181 = vunpack.c.h.b16 %v2145
    %v2182 = vunpack.c.l.b16 %v2146
    %v2183 = vunpack.c.h.b16 %v2146
    %v2184 = vunpack.c.l.b16 %v2147
    %v2185 = vunpack.c.h.b16 %v2147
    %v2186 = vunpack.c.l.b16 %v2148
    %v2187 = vunpack.c.h.b16 %v2148
    %v2188 = vunpack.c.l.b16 %v2149
    %v2189 = vunpack.c.h.b16 %v2149
    %v2190 = vunpack.c.l.b16 %v2150
    %v2191 = vunpack.c.h.b16 %v2150
    %v2192 = vunpack.c.l.b16 %v2151
    %v2193 = vunpack.c.h.b16 %v2151
    %v2194 = vunpack.c.l.b16 %v2152
    %v2195 = vunpack.c.h.b16 %v2152
    %v2196 = vunpack.c.l.b16 %v2153
    %v2197 = vunpack.c.h.b16 %v2153
    %v2198 = vunpack.c.l.b16 %v2154
    %v2199 = vunpack.c.h.b16 %v2154
    %v2200 = vunpack.c.l.b16 %v2155
    %v2201 = vunpack.c.h.b16 %v2155
    %v2202 = vunpack.c.l.b16 %v2156
    %v2203 = vunpack.c.h.b16 %v2156
    %v2204 = vunpack.c.l.b16 %v2157
    %v2205 = vunpack.c.h.b16 %v2157
    %v2206 = vpack.c.b16 %v2174, %v2174
    %v2207 = vpack.c.b16 %v2175, %v2175
    %v2208 = vpack.c.b16 %v2176, %v2176
    %v2209 = vpack.c.b16 %v2177, %v2177
    %v2210 = vpack.c.b16 %v2178, %v2178
    %v2211 = vpack.c.b16 %v2179, %v2179
    %v2212 = vpack.c.b16 %v2180, %v2180
    %v2213 = vpack.c.b16 %v2181, %v2181
    %v2214 = vpack.c.b16 %v2182, %v2182
    %v2215 = vpack.c.b16 %v2183, %v2183
    %v2216 = vpack.c.b16 %v2184, %v2184
    %v2217 = vpack.c.b16 %v2185, %v2185
    %v2218 = vpack.c.b16 %v2186, %v2186
    %v2219 = vpack.c.b16 %v2187, %v2187
    %v2220 = vpack.c.b16 %v2188, %v2188
    %v2221 = vpack.c.b16 %v2189, %v2189
    %v2222 = vpack.c.b16 %v2190, %v2190
    %v2223 = vpack.c.b16 %v2191, %v2191
    %v2224 = vpack.c.b16 %v2192, %v2192
    %v2225 = vpack.c.b16 %v2193, %v2193
    %v2226 = vpack.c.b16 %v2194, %v2194
    %v2227 = vpack.c.b16 %v2195, %v2195
    %v2228 = vpack.c.b16 %v2196, %v2196
    %v2229 = vpack.c.b16 %v2197, %v2197
    %v2230 = vpack.c.b16 %v2198, %v2198
    %v2231 = vpack.c.b16 %v2199, %v2199
    %v2232 = vpack.c.b16 %v2200, %v2200
    %v2233 = vpack.c.b16 %v2201, %v2201
    %v2234 = vpack.c.b16 %v2202, %v2202
    %v2235 = vpack.c.b16 %v2203, %v2203
    %v2236 = vpack.c.b16 %v2204, %v2204
    %v2237 = vpack.c.b16 %v2205, %v2205
    %vm2270 = vcmask 125952
    %2271 = vst.msk [vmem:[#allocation2] sm:$0xf] %vm2270, %v2206
    %2272 = vst.msk [vmem:[#allocation2 + $0x4] sm:$0xf] %vm2270, %v2207
    %2273 = vst.msk [vmem:[#allocation2 + $0x8] sm:$0xf] %vm2270, %v2208
    %2274 = vst.msk [vmem:[#allocation2 + $0xc] sm:$0xf] %vm2270, %v2209
    %2275 = vst.msk [vmem:[#allocation2 + $0x10] sm:$0xf] %vm2270, %v2210
    %2276 = vst.msk [vmem:[#allocation2 + $0x14] sm:$0xf] %vm2270, %v2211
    %2277 = vst.msk [vmem:[#allocation2 + $0x18] sm:$0xf] %vm2270, %v2212
    %2278 = vst.msk [vmem:[#allocation2 + $0x1c] sm:$0xf] %vm2270, %v2213
    %2279 = vst.msk [vmem:[#allocation2 + $0x20] sm:$0xf] %vm2270, %v2214
    %2280 = vst.msk [vmem:[#allocation2 + $0x24] sm:$0xf] %vm2270, %v2215
    %2281 = vst.msk [vmem:[#allocation2 + $0x28] sm:$0xf] %vm2270, %v2216
    %2282 = vst.msk [vmem:[#allocation2 + $0x2c] sm:$0xf] %vm2270, %v2217
    %2283 = vst.msk [vmem:[#allocation2 + $0x30] sm:$0xf] %vm2270, %v2218
    %2284 = vst.msk [vmem:[#allocation2 + $0x34] sm:$0xf] %vm2270, %v2219
    %2285 = vst.msk [vmem:[#allocation2 + $0x38] sm:$0xf] %vm2270, %v2220
    %2286 = vst.msk [vmem:[#allocation2 + $0x3c] sm:$0xf] %vm2270, %v2221
    %2287 = vst.msk [vmem:[#allocation2 + $0x40] sm:$0xf] %vm2270, %v2222
    %2288 = vst.msk [vmem:[#allocation2 + $0x44] sm:$0xf] %vm2270, %v2223
    %2289 = vst.msk [vmem:[#allocation2 + $0x48] sm:$0xf] %vm2270, %v2224
    %2290 = vst.msk [vmem:[#allocation2 + $0x4c] sm:$0xf] %vm2270, %v2225
    %2291 = vst.msk [vmem:[#allocation2 + $0x50] sm:$0xf] %vm2270, %v2226
    %2292 = vst.msk [vmem:[#allocation2 + $0x54] sm:$0xf] %vm2270, %v2227
    %2293 = vst.msk [vmem:[#allocation2 + $0x58] sm:$0xf] %vm2270, %v2228
    %2294 = vst.msk [vmem:[#allocation2 + $0x5c] sm:$0xf] %vm2270, %v2229
    %2295 = vst.msk [vmem:[#allocation2 + $0x60] sm:$0xf] %vm2270, %v2230
    %2296 = vst.msk [vmem:[#allocation2 + $0x64] sm:$0xf] %vm2270, %v2231
    %2297 = vst.msk [vmem:[#allocation2 + $0x68] sm:$0xf] %vm2270, %v2232
    %2298 = vst.msk [vmem:[#allocation2 + $0x6c] sm:$0xf] %vm2270, %v2233
    %2299 = vst.msk [vmem:[#allocation2 + $0x70] sm:$0xf] %vm2270, %v2234
    %2300 = vst.msk [vmem:[#allocation2 + $0x74] sm:$0xf] %vm2270, %v2235
    %2301 = vst.msk [vmem:[#allocation2 + $0x78] sm:$0xf] %vm2270, %v2236
    %2302 = vst.msk [vmem:[#allocation2 + $0x7c] sm:$0xf] %vm2270, %v2237
    // Predicated region
    $region18: #{tpu_custom_call.1} parent=1 // pred_check
      _
    $region19: #{tpu_custom_call.1} parent=1 // pred_check_branch
      %2304 = sbr.rel (0) target = $region21
    $region20: #{tpu_custom_call.1} parent=1 // pred_region
      %s2306 = ssub.s32 2048, 2048
      %2307 = vsyncadd [#allocation3], %s2306
      %s2308 = sshll.u32 [#allocation2], 4
      %s2309 = int_to_ptr.vmem [resolvable:$true] %s2308
      %2314 = dma.vmem_to_hbm [thread:$0]  %s2309, 2048, %s4, [#allocation3], 64, 64, 4
    $region21: #{tpu_custom_call.1} parent=1 // pred_fallthru
      _
    // Predicated region
    $region22: #{tpu_custom_call.1} parent=1 // pred_check
      _
    $region23: #{tpu_custom_call.1} parent=1 // pred_check_branch
      %2316 = sbr.rel (0) target = $region25
    $region24: #{tpu_custom_call.1} parent=1 // pred_region
      %2317 = dma.done [#allocation3], 2048
    $region25: #{tpu_custom_call.1} parent=1 // pred_fallthru
      _
    %2318 = vsyncpa [#allocation3], 1

</llo_original>
